<compile_context>
chip_gen: v6e
topology: v6e:2x2x1
jax: 0.10.0
libtpu: 0.0.40
codegen_flags: <defaults>
</compile_context>

<pallas_src>
import functools

import jax
import jax.numpy as jnp
from jax.experimental import pallas as pl
from jax.experimental.pallas import tpu as pltpu


# ----------------------------- in-kernel helpers -----------------------------

def _layernorm(x, eps=1e-6):
    # LayerNorm with elementwise_affine=False (no gamma/beta), eps=1e-6.  f32.
    mu = jnp.mean(x, axis=-1, keepdims=True)
    xc = x - mu
    var = jnp.mean(xc * xc, axis=-1, keepdims=True)
    return xc * jax.lax.rsqrt(var + eps)


def _gelu_tanh(x):
    # nn.GELU(approximate='tanh'), computed in f32.
    c = 0.7978845608028654  # sqrt(2/pi)
    return 0.5 * x * (1.0 + jnp.tanh(c * (x + 0.044715 * x * x * x)))


def _bf16(x):
    return x.astype(jnp.bfloat16)


# --------------------------------- kernel ------------------------------------

def dit_block_kernel(num_heads, head_dim,
                     c_ref, x_ref,
                     w_ada_ref, b_ada_ref,
                     w_qkv_ref, b_qkv_ref,
                     w_proj_ref, b_proj_ref,
                     w_fc1_ref, b_fc1_ref,
                     w_fc2_ref, b_fc2_ref,
                     o_ref,
                     attn_sc):
    D = num_heads * head_dim
    x = x_ref[0]          # (N, D) f32
    c = c_ref[0]          # (1, D) f32

    # ---- adaLN modulation: SiLU(c) then ONE fused (1,D)x(D,6D) matmul --------
    silu = c * jax.nn.sigmoid(c)                                   # (1, D) f32
    ada = jnp.dot(_bf16(silu), w_ada_ref[...],
                  preferred_element_type=jnp.float32) + b_ada_ref[...]   # (1, 6D)
    shift_msa = ada[:, 0 * D:1 * D]
    scale_msa = ada[:, 1 * D:2 * D]
    gate_msa  = ada[:, 2 * D:3 * D]
    shift_mlp = ada[:, 3 * D:4 * D]
    scale_mlp = ada[:, 4 * D:5 * D]
    gate_mlp  = ada[:, 5 * D:6 * D]

    # ---- self-attention branch (fused QKV matmul) ----------------------------
    xm = _layernorm(x) * (1.0 + scale_msa) + shift_msa             # (N, D) f32
    qkv = jnp.dot(_bf16(xm), w_qkv_ref[...],
                  preferred_element_type=jnp.float32) + b_qkv_ref[...]   # (N, 3D) f32

    scale = head_dim ** -0.5
    q = qkv[:, 0 * D:1 * D] * scale          # fold softmax scale into q
    k = qkv[:, 1 * D:2 * D]
    v = qkv[:, 2 * D:3 * D]

    q_bf, k_bf, v_bf = _bf16(q), _bf16(k), _bf16(v)

    # Static per-head loop; each head's output goes into its slice of the VMEM
    # scratch (no jnp.concatenate).  Scores contracted over the last dims via
    # dot_general (no explicit k.T).
    dn_qkT = (((1,), (1,)), ((), ()))        # contract last dim of q with last dim of k
    for h in range(num_heads):               # small, static unroll
        sl = slice(h * head_dim, (h + 1) * head_dim)
        qh, kh, vh = q_bf[:, sl], k_bf[:, sl], v_bf[:, sl]         # (N, hd) bf16
        s = jax.lax.dot_general(qh, kh, dn_qkT,
                                preferred_element_type=jnp.float32)      # (N, N) f32
        s = s - jnp.max(s, axis=-1, keepdims=True)
        p = jnp.exp(s)
        p = p * pl.reciprocal(jnp.sum(p, axis=-1, keepdims=True), approx=True)
        attn_sc[:, sl] = jnp.dot(_bf16(p), vh,
                                 preferred_element_type=jnp.float32)     # (N, hd)

    attn = jnp.dot(_bf16(attn_sc[...]), w_proj_ref[...],
                   preferred_element_type=jnp.float32) + b_proj_ref[...]  # (N, D)

    x1 = x + gate_msa * attn                                        # residual (f32)

    # ---- MLP branch ----------------------------------------------------------
    xm2 = _layernorm(x1) * (1.0 + scale_mlp) + shift_mlp
    h1 = jnp.dot(_bf16(xm2), w_fc1_ref[...],
                 preferred_element_type=jnp.float32) + b_fc1_ref[...]
    h1 = _gelu_tanh(h1)
    h2 = jnp.dot(_bf16(h1), w_fc2_ref[...],
                 preferred_element_type=jnp.float32) + b_fc2_ref[...]

    o_ref[0] = (x1 + gate_mlp * h2).astype(o_ref.dtype)


# --------------------------------- wrapper -----------------------------------

def dit_block_pallas(x, c, params, num_heads):
    B, N, D = x.shape
    head_dim = D // num_heads
    c3 = c.reshape(B, 1, D)

    kernel = functools.partial(dit_block_kernel, num_heads, head_dim)

    # Matmul weights in bf16 (MXU fast path, half the VMEM); biases stay f32.
    weight_args = [
        params["w_ada"].astype(jnp.bfloat16), params["b_ada"],
        params["w_qkv"].astype(jnp.bfloat16), params["b_qkv"],
        params["w_proj"].astype(jnp.bfloat16), params["b_proj"],
        params["w_fc1"].astype(jnp.bfloat16), params["b_fc1"],
        params["w_fc2"].astype(jnp.bfloat16), params["b_fc2"],
    ]

    def full_spec(a):
        return pl.BlockSpec(a.shape, lambda b: (0,) * a.ndim)

    in_specs = [
        pl.BlockSpec((1, 1, D), lambda b: (b, 0, 0)),   # c
        pl.BlockSpec((1, N, D), lambda b: (b, 0, 0)),   # x
    ] + [full_spec(w) for w in weight_args]

    return pl.pallas_call(
        kernel,
        out_shape=jax.ShapeDtypeStruct((B, N, D), x.dtype),
        grid=(B,),
        in_specs=in_specs,
        out_specs=pl.BlockSpec((1, N, D), lambda b: (b, 0, 0)),
        scratch_shapes=[pltpu.VMEM((N, D), jnp.float32)],   # per-head attn accumulator
        compiler_params=pltpu.CompilerParams(
            dimension_semantics=("parallel",),               # batch is independent
            vmem_limit_bytes=64 * 1024 * 1024),
    )(c3, x, *weight_args)


# ----------------------------- pure-JAX reference ----------------------------

def _ref_single(x, c, p, num_heads):
    D = x.shape[-1]
    hd = D // num_heads
    silu = c * jax.nn.sigmoid(c)
    ada = silu @ p["w_ada"] + p["b_ada"][0]
    shift_msa, scale_msa, gate_msa, shift_mlp, scale_mlp, gate_mlp = [
        ada[i * D:(i + 1) * D] for i in range(6)]

    xm = _layernorm(x) * (1.0 + scale_msa) + shift_msa
    qkv = xm @ p["w_qkv"] + p["b_qkv"][0]
    q, k_, v = qkv[:, :D], qkv[:, D:2 * D], qkv[:, 2 * D:]
    scale = hd ** -0.5
    outs = []
    for h in range(num_heads):
        sl = slice(h * hd, (h + 1) * hd)
        s = (q[:, sl] @ k_[:, sl].T) * scale
        pr = jax.nn.softmax(s, axis=-1)
        outs.append(pr @ v[:, sl])
    attn = jnp.concatenate(outs, axis=-1) @ p["w_proj"] + p["b_proj"][0]
    x1 = x + gate_msa * attn

    xm2 = _layernorm(x1) * (1.0 + scale_mlp) + shift_mlp
    h1 = _gelu_tanh(xm2 @ p["w_fc1"] + p["b_fc1"][0])
    h2 = h1 @ p["w_fc2"] + p["b_fc2"][0]
    return x1 + gate_mlp * h2


def dit_block_ref(x, c, p, num_heads):
    return jax.vmap(_ref_single, in_axes=(0, 0, None, None))(x, c, p, num_heads)


# ------------------------------------ main ------------------------------------

if __name__ == "__main__":
    B, N, D = 2, 16, 64
    num_heads = 4
    mlp_ratio = 4.0
    Hm = int(D * mlp_ratio)

    key = jax.random.PRNGKey(0)
    ks = jax.random.split(key, 14)
    init = lambda k, shape, s=0.02: (s * jax.random.normal(k, shape)).astype(jnp.float32)

    params = {
        # adaLN_modulation Linear(D -> 6D), fused weight (output chunk k is cols kD:(k+1)D)
        "w_ada": init(ks[0], (D, 6 * D)),
        "b_ada": init(ks[1], (1, 6 * D)),
        # attention qkv Linear(D -> 3D, bias=True), fused (q | k | v along output cols)
        "w_qkv": init(ks[2], (D, 3 * D)),
        "b_qkv": init(ks[3], (1, 3 * D)),
        # attention output proj
        "w_proj": init(ks[4], (D, D)),
        "b_proj": init(ks[5], (1, D)),
        # MLP
        "w_fc1": init(ks[6], (D, Hm)),
        "b_fc1": init(ks[7], (1, Hm)),
        "w_fc2": init(ks[8], (Hm, D)),
        "b_fc2": init(ks[9], (1, D)),
    }

    x = jax.random.normal(ks[10], (B, N, D), dtype=jnp.float32)
    c = jax.random.normal(ks[11], (B, D), dtype=jnp.float32)

    out = dit_block_pallas(x, c, params, num_heads)
    out = jax.block_until_ready(out)

    ref = jax.block_until_ready(dit_block_ref(x, c, params, num_heads))
    assert out.shape == (B, N, D)
    assert jnp.allclose(out, ref, rtol=1e-2, atol=1e-2), (
        f"max abs err {jnp.max(jnp.abs(out - ref))}")

    print("KERNEL_OK")
</pallas_src>

<mosaic_0001>
module attributes {stable_mosaic.version = 11 : i64} {
  func.func @dit_block_kernel(%arg0: i32, %arg1: memref<1x1x64xf32, #tpu.memory_space<vmem>>, %arg2: memref<1x16x64xf32, #tpu.memory_space<vmem>>, %arg3: memref<64x384xbf16, #tpu.memory_space<vmem>>, %arg4: memref<1x384xf32, #tpu.memory_space<vmem>>, %arg5: memref<64x192xbf16, #tpu.memory_space<vmem>>, %arg6: memref<1x192xf32, #tpu.memory_space<vmem>>, %arg7: memref<64x64xbf16, #tpu.memory_space<vmem>>, %arg8: memref<1x64xf32, #tpu.memory_space<vmem>>, %arg9: memref<64x256xbf16, #tpu.memory_space<vmem>>, %arg10: memref<1x256xf32, #tpu.memory_space<vmem>>, %arg11: memref<256x64xbf16, #tpu.memory_space<vmem>>, %arg12: memref<1x64xf32, #tpu.memory_space<vmem>>, %arg13: memref<1x16x64xf32, #tpu.memory_space<vmem>>, %arg14: memref<16x64xf32, #tpu.memory_space<vmem>>) attributes {dimension_semantics = [#tpu.dimension_semantics<parallel>], iteration_bounds = array<i64: 2>, scalar_prefetch = 0 : i64, scratch_operands = 1 : i64, tpu.core_type = #tpu.core_type<tc>, window_params = [{transform_indices = @transform_0, window_bounds = array<i64: 1, 1, 64>}, {transform_indices = @transform_1, window_bounds = array<i64: 1, 16, 64>}, {pipeline_mode = #tpu.pipeline_mode<synchronous>, transform_indices = @transform_2, window_bounds = array<i64: 64, 384>}, {pipeline_mode = #tpu.pipeline_mode<synchronous>, transform_indices = @transform_3, window_bounds = array<i64: 1, 384>}, {pipeline_mode = #tpu.pipeline_mode<synchronous>, transform_indices = @transform_4, window_bounds = array<i64: 64, 192>}, {pipeline_mode = #tpu.pipeline_mode<synchronous>, transform_indices = @transform_5, window_bounds = array<i64: 1, 192>}, {pipeline_mode = #tpu.pipeline_mode<synchronous>, transform_indices = @transform_6, window_bounds = array<i64: 64, 64>}, {pipeline_mode = #tpu.pipeline_mode<synchronous>, transform_indices = @transform_7, window_bounds = array<i64: 1, 64>}, {pipeline_mode = #tpu.pipeline_mode<synchronous>, transform_indices = @transform_8, window_bounds = array<i64: 64, 256>}, {pipeline_mode = #tpu.pipeline_mode<synchronous>, transform_indices = @transform_9, window_bounds = array<i64: 1, 256>}, {pipeline_mode = #tpu.pipeline_mode<synchronous>, transform_indices = @transform_10, window_bounds = array<i64: 256, 64>}, {pipeline_mode = #tpu.pipeline_mode<synchronous>, transform_indices = @transform_11, window_bounds = array<i64: 1, 64>}, {transform_indices = @transform_12, window_bounds = array<i64: 1, 16, 64>}]} {
    %c0 = arith.constant 0 : index
    %c0_0 = arith.constant 0 : index
    %c0_1 = arith.constant 0 : index
    %0 = vector.load %arg2[%c0, %c0_0, %c0_1] : memref<1x16x64xf32, #tpu.memory_space<vmem>>, vector<1x16x64xf32>
    %1 = vector.shape_cast %0 : vector<1x16x64xf32> to vector<16x64xf32>
    %c0_2 = arith.constant 0 : index
    %c0_3 = arith.constant 0 : index
    %c0_4 = arith.constant 0 : index
    %2 = vector.load %arg1[%c0_2, %c0_3, %c0_4] : memref<1x1x64xf32, #tpu.memory_space<vmem>>, vector<1x1x64xf32>
    %3 = vector.shape_cast %2 : vector<1x1x64xf32> to vector<1x64xf32>
    %4 = arith.negf %3 : vector<1x64xf32>
    %5 = math.exp %4 : vector<1x64xf32>
    %cst = arith.constant 1.000000e+00 : f32
    %6 = vector.broadcast %cst : f32 to vector<1x64xf32>
    %7 = arith.addf %6, %5 : vector<1x64xf32>
    %8 = arith.divf %6, %7 : vector<1x64xf32>
    %9 = arith.mulf %3, %8 : vector<1x64xf32>
    %10 = arith.truncf %9 : vector<1x64xf32> to vector<1x64xbf16>
    %c0_5 = arith.constant 0 : index
    %c0_6 = arith.constant 0 : index
    %11 = vector.load %arg3[%c0_5, %c0_6] : memref<64x384xbf16, #tpu.memory_space<vmem>>, vector<64x384xbf16>
    %cst_7 = arith.constant dense<0.000000e+00> : vector<1x384xf32>
    %12 = tpu.matmul %10, %11, %cst_7 {dimension_numbers = #tpu.dot_dimension_numbers<[1], [0], [0], [1], [0, 0, 1, 1], [], []>} : vector<1x64xbf16>, vector<64x384xbf16>, vector<1x384xf32> -> vector<1x384xf32>
    %c0_8 = arith.constant 0 : index
    %c0_9 = arith.constant 0 : index
    %13 = vector.load %arg4[%c0_8, %c0_9] : memref<1x384xf32, #tpu.memory_space<vmem>>, vector<1x384xf32>
    %14 = arith.addf %12, %13 : vector<1x384xf32>
    %15 = vector.extract_strided_slice %14 {offsets = [0, 0], sizes = [1, 64], strides = [1, 1]} : vector<1x384xf32> to vector<1x64xf32>
    %16 = vector.extract_strided_slice %14 {offsets = [0, 64], sizes = [1, 64], strides = [1, 1]} : vector<1x384xf32> to vector<1x64xf32>
    %17 = vector.extract_strided_slice %14 {offsets = [0, 128], sizes = [1, 64], strides = [1, 1]} : vector<1x384xf32> to vector<1x64xf32>
    %18 = vector.extract_strided_slice %14 {offsets = [0, 192], sizes = [1, 64], strides = [1, 1]} : vector<1x384xf32> to vector<1x64xf32>
    %19 = vector.extract_strided_slice %14 {offsets = [0, 256], sizes = [1, 64], strides = [1, 1]} : vector<1x384xf32> to vector<1x64xf32>
    %20 = vector.extract_strided_slice %14 {offsets = [0, 320], sizes = [1, 64], strides = [1, 1]} : vector<1x384xf32> to vector<1x64xf32>
    %cst_10 = arith.constant dense<0.000000e+00> : vector<16xf32>
    %21 = vector.multi_reduction <add>, %1, %cst_10 [1] : vector<16x64xf32> to vector<16xf32>
    %22 = vector.shape_cast %21 : vector<16xf32> to vector<16x1xf32>
    %cst_11 = arith.constant 6.400000e+01 : f32
    %23 = vector.broadcast %cst_11 : f32 to vector<16x1xf32>
    %24 = arith.divf %22, %23 : vector<16x1xf32>
    %25 = vector.broadcast %24 : vector<16x1xf32> to vector<16x64xf32>
    %26 = arith.subf %1, %25 : vector<16x64xf32>
    %27 = arith.mulf %26, %26 : vector<16x64xf32>
    %cst_12 = arith.constant dense<0.000000e+00> : vector<16xf32>
    %28 = vector.multi_reduction <add>, %27, %cst_12 [1] : vector<16x64xf32> to vector<16xf32>
    %29 = vector.shape_cast %28 : vector<16xf32> to vector<16x1xf32>
    %cst_13 = arith.constant 6.400000e+01 : f32
    %30 = vector.broadcast %cst_13 : f32 to vector<16x1xf32>
    %31 = arith.divf %29, %30 : vector<16x1xf32>
    %cst_14 = arith.constant 9.99999997E-7 : f32
    %32 = vector.broadcast %cst_14 : f32 to vector<16x1xf32>
    %33 = arith.addf %31, %32 : vector<16x1xf32>
    %34 = math.rsqrt %33 : vector<16x1xf32>
    %35 = vector.broadcast %34 : vector<16x1xf32> to vector<16x64xf32>
    %36 = arith.mulf %26, %35 : vector<16x64xf32>
    %cst_15 = arith.constant 1.000000e+00 : f32
    %37 = vector.broadcast %cst_15 : f32 to vector<1x64xf32>
    %38 = arith.addf %37, %16 : vector<1x64xf32>
    %39 = vector.broadcast %38 : vector<1x64xf32> to vector<16x64xf32>
    %40 = arith.mulf %36, %39 : vector<16x64xf32>
    %41 = vector.broadcast %15 : vector<1x64xf32> to vector<16x64xf32>
    %42 = arith.addf %40, %41 : vector<16x64xf32>
    %43 = arith.truncf %42 : vector<16x64xf32> to vector<16x64xbf16>
    %c0_16 = arith.constant 0 : index
    %c0_17 = arith.constant 0 : index
    %44 = vector.load %arg5[%c0_16, %c0_17] : memref<64x192xbf16, #tpu.memory_space<vmem>>, vector<64x192xbf16>
    %cst_18 = arith.constant dense<0.000000e+00> : vector<16x192xf32>
    %45 = tpu.matmul %43, %44, %cst_18 {dimension_numbers = #tpu.dot_dimension_numbers<[1], [0], [0], [1], [0, 0, 1, 1], [], []>} : vector<16x64xbf16>, vector<64x192xbf16>, vector<16x192xf32> -> vector<16x192xf32>
    %c0_19 = arith.constant 0 : index
    %c0_20 = arith.constant 0 : index
    %46 = vector.load %arg6[%c0_19, %c0_20] : memref<1x192xf32, #tpu.memory_space<vmem>>, vector<1x192xf32>
    %47 = vector.broadcast %46 : vector<1x192xf32> to vector<16x192xf32>
    %48 = arith.addf %45, %47 : vector<16x192xf32>
    %49 = vector.extract_strided_slice %48 {offsets = [0, 0], sizes = [16, 64], strides = [1, 1]} : vector<16x192xf32> to vector<16x64xf32>
    %cst_21 = arith.constant 2.500000e-01 : f32
    %50 = vector.broadcast %cst_21 : f32 to vector<16x64xf32>
    %51 = arith.mulf %49, %50 : vector<16x64xf32>
    %52 = vector.extract_strided_slice %48 {offsets = [0, 64], sizes = [16, 64], strides = [1, 1]} : vector<16x192xf32> to vector<16x64xf32>
    %53 = vector.extract_strided_slice %48 {offsets = [0, 128], sizes = [16, 64], strides = [1, 1]} : vector<16x192xf32> to vector<16x64xf32>
    %54 = arith.truncf %51 : vector<16x64xf32> to vector<16x64xbf16>
    %55 = arith.truncf %52 : vector<16x64xf32> to vector<16x64xbf16>
    %56 = arith.truncf %53 : vector<16x64xf32> to vector<16x64xbf16>
    %57 = vector.extract_strided_slice %54 {offsets = [0, 0], sizes = [16, 16], strides = [1, 1]} : vector<16x64xbf16> to vector<16x16xbf16>
    %58 = vector.extract_strided_slice %55 {offsets = [0, 0], sizes = [16, 16], strides = [1, 1]} : vector<16x64xbf16> to vector<16x16xbf16>
    %59 = vector.extract_strided_slice %56 {offsets = [0, 0], sizes = [16, 16], strides = [1, 1]} : vector<16x64xbf16> to vector<16x16xbf16>
    %cst_22 = arith.constant dense<0.000000e+00> : vector<16x16xf32>
    %60 = tpu.matmul %57, %58, %cst_22 {dimension_numbers = #tpu.dot_dimension_numbers<[1], [1], [0], [0], [0, 0, 1, 0], [], []>} : vector<16x16xbf16>, vector<16x16xbf16>, vector<16x16xf32> -> vector<16x16xf32>
    %cst_23 = arith.constant dense<0xFF800000> : vector<16xf32>
    %61 = vector.multi_reduction <maximumf>, %60, %cst_23 [1] : vector<16x16xf32> to vector<16xf32>
    %62 = vector.shape_cast %61 : vector<16xf32> to vector<16x1xf32>
    %63 = vector.broadcast %62 : vector<16x1xf32> to vector<16x16xf32>
    %64 = arith.subf %60, %63 : vector<16x16xf32>
    %65 = math.exp %64 : vector<16x16xf32>
    %cst_24 = arith.constant dense<0.000000e+00> : vector<16xf32>
    %66 = vector.multi_reduction <add>, %65, %cst_24 [1] : vector<16x16xf32> to vector<16xf32>
    %67 = vector.shape_cast %66 : vector<16xf32> to vector<16x1xf32>
    %68 = tpu.reciprocal %67 {approx = true} : vector<16x1xf32> -> vector<16x1xf32>
    %69 = vector.broadcast %68 : vector<16x1xf32> to vector<16x16xf32>
    %70 = arith.mulf %65, %69 : vector<16x16xf32>
    %71 = arith.truncf %70 : vector<16x16xf32> to vector<16x16xbf16>
    %cst_25 = arith.constant dense<0.000000e+00> : vector<16x16xf32>
    %72 = tpu.matmul %71, %59, %cst_25 {dimension_numbers = #tpu.dot_dimension_numbers<[1], [0], [0], [1], [0, 0, 1, 1], [], []>} : vector<16x16xbf16>, vector<16x16xbf16>, vector<16x16xf32> -> vector<16x16xf32>
    %c0_26 = arith.constant 0 : index
    %c0_27 = arith.constant 0 : index
    %73 = vector.load %arg14[%c0_26, %c0_27] : memref<16x64xf32, #tpu.memory_space<vmem>>, vector<16x16xf32>
    tpu.vector_store %arg14[%c0_26, %c0_27], %72 {strides = array<i32>} : memref<16x64xf32, #tpu.memory_space<vmem>>, vector<16x16xf32>,
    %74 = vector.extract_strided_slice %54 {offsets = [0, 16], sizes = [16, 16], strides = [1, 1]} : vector<16x64xbf16> to vector<16x16xbf16>
    %75 = vector.extract_strided_slice %55 {offsets = [0, 16], sizes = [16, 16], strides = [1, 1]} : vector<16x64xbf16> to vector<16x16xbf16>
    %76 = vector.extract_strided_slice %56 {offsets = [0, 16], sizes = [16, 16], strides = [1, 1]} : vector<16x64xbf16> to vector<16x16xbf16>
    %cst_28 = arith.constant dense<0.000000e+00> : vector<16x16xf32>
    %77 = tpu.matmul %74, %75, %cst_28 {dimension_numbers = #tpu.dot_dimension_numbers<[1], [1], [0], [0], [0, 0, 1, 0], [], []>} : vector<16x16xbf16>, vector<16x16xbf16>, vector<16x16xf32> -> vector<16x16xf32>
    %cst_29 = arith.constant dense<0xFF800000> : vector<16xf32>
    %78 = vector.multi_reduction <maximumf>, %77, %cst_29 [1] : vector<16x16xf32> to vector<16xf32>
    %79 = vector.shape_cast %78 : vector<16xf32> to vector<16x1xf32>
    %80 = vector.broadcast %79 : vector<16x1xf32> to vector<16x16xf32>
    %81 = arith.subf %77, %80 : vector<16x16xf32>
    %82 = math.exp %81 : vector<16x16xf32>
    %cst_30 = arith.constant dense<0.000000e+00> : vector<16xf32>
    %83 = vector.multi_reduction <add>, %82, %cst_30 [1] : vector<16x16xf32> to vector<16xf32>
    %84 = vector.shape_cast %83 : vector<16xf32> to vector<16x1xf32>
    %85 = tpu.reciprocal %84 {approx = true} : vector<16x1xf32> -> vector<16x1xf32>
    %86 = vector.broadcast %85 : vector<16x1xf32> to vector<16x16xf32>
    %87 = arith.mulf %82, %86 : vector<16x16xf32>
    %88 = arith.truncf %87 : vector<16x16xf32> to vector<16x16xbf16>
    %cst_31 = arith.constant dense<0.000000e+00> : vector<16x16xf32>
    %89 = tpu.matmul %88, %76, %cst_31 {dimension_numbers = #tpu.dot_dimension_numbers<[1], [0], [0], [1], [0, 0, 1, 1], [], []>} : vector<16x16xbf16>, vector<16x16xbf16>, vector<16x16xf32> -> vector<16x16xf32>
    %c0_32 = arith.constant 0 : index
    %c16 = arith.constant 16 : index
    %90 = vector.load %arg14[%c0_32, %c16] : memref<16x64xf32, #tpu.memory_space<vmem>>, vector<16x16xf32>
    tpu.vector_store %arg14[%c0_32, %c16], %89 {strides = array<i32>} : memref<16x64xf32, #tpu.memory_space<vmem>>, vector<16x16xf32>,
    %91 = vector.extract_strided_slice %54 {offsets = [0, 32], sizes = [16, 16], strides = [1, 1]} : vector<16x64xbf16> to vector<16x16xbf16>
    %92 = vector.extract_strided_slice %55 {offsets = [0, 32], sizes = [16, 16], strides = [1, 1]} : vector<16x64xbf16> to vector<16x16xbf16>
    %93 = vector.extract_strided_slice %56 {offsets = [0, 32], sizes = [16, 16], strides = [1, 1]} : vector<16x64xbf16> to vector<16x16xbf16>
    %cst_33 = arith.constant dense<0.000000e+00> : vector<16x16xf32>
    %94 = tpu.matmul %91, %92, %cst_33 {dimension_numbers = #tpu.dot_dimension_numbers<[1], [1], [0], [0], [0, 0, 1, 0], [], []>} : vector<16x16xbf16>, vector<16x16xbf16>, vector<16x16xf32> -> vector<16x16xf32>
    %cst_34 = arith.constant dense<0xFF800000> : vector<16xf32>
    %95 = vector.multi_reduction <maximumf>, %94, %cst_34 [1] : vector<16x16xf32> to vector<16xf32>
    %96 = vector.shape_cast %95 : vector<16xf32> to vector<16x1xf32>
    %97 = vector.broadcast %96 : vector<16x1xf32> to vector<16x16xf32>
    %98 = arith.subf %94, %97 : vector<16x16xf32>
    %99 = math.exp %98 : vector<16x16xf32>
    %cst_35 = arith.constant dense<0.000000e+00> : vector<16xf32>
    %100 = vector.multi_reduction <add>, %99, %cst_35 [1] : vector<16x16xf32> to vector<16xf32>
    %101 = vector.shape_cast %100 : vector<16xf32> to vector<16x1xf32>
    %102 = tpu.reciprocal %101 {approx = true} : vector<16x1xf32> -> vector<16x1xf32>
    %103 = vector.broadcast %102 : vector<16x1xf32> to vector<16x16xf32>
    %104 = arith.mulf %99, %103 : vector<16x16xf32>
    %105 = arith.truncf %104 : vector<16x16xf32> to vector<16x16xbf16>
    %cst_36 = arith.constant dense<0.000000e+00> : vector<16x16xf32>
    %106 = tpu.matmul %105, %93, %cst_36 {dimension_numbers = #tpu.dot_dimension_numbers<[1], [0], [0], [1], [0, 0, 1, 1], [], []>} : vector<16x16xbf16>, vector<16x16xbf16>, vector<16x16xf32> -> vector<16x16xf32>
    %c0_37 = arith.constant 0 : index
    %c32 = arith.constant 32 : index
    %107 = vector.load %arg14[%c0_37, %c32] : memref<16x64xf32, #tpu.memory_space<vmem>>, vector<16x16xf32>
    tpu.vector_store %arg14[%c0_37, %c32], %106 {strides = array<i32>} : memref<16x64xf32, #tpu.memory_space<vmem>>, vector<16x16xf32>,
    %108 = vector.extract_strided_slice %54 {offsets = [0, 48], sizes = [16, 16], strides = [1, 1]} : vector<16x64xbf16> to vector<16x16xbf16>
    %109 = vector.extract_strided_slice %55 {offsets = [0, 48], sizes = [16, 16], strides = [1, 1]} : vector<16x64xbf16> to vector<16x16xbf16>
    %110 = vector.extract_strided_slice %56 {offsets = [0, 48], sizes = [16, 16], strides = [1, 1]} : vector<16x64xbf16> to vector<16x16xbf16>
    %cst_38 = arith.constant dense<0.000000e+00> : vector<16x16xf32>
    %111 = tpu.matmul %108, %109, %cst_38 {dimension_numbers = #tpu.dot_dimension_numbers<[1], [1], [0], [0], [0, 0, 1, 0], [], []>} : vector<16x16xbf16>, vector<16x16xbf16>, vector<16x16xf32> -> vector<16x16xf32>
    %cst_39 = arith.constant dense<0xFF800000> : vector<16xf32>
    %112 = vector.multi_reduction <maximumf>, %111, %cst_39 [1] : vector<16x16xf32> to vector<16xf32>
    %113 = vector.shape_cast %112 : vector<16xf32> to vector<16x1xf32>
    %114 = vector.broadcast %113 : vector<16x1xf32> to vector<16x16xf32>
    %115 = arith.subf %111, %114 : vector<16x16xf32>
    %116 = math.exp %115 : vector<16x16xf32>
    %cst_40 = arith.constant dense<0.000000e+00> : vector<16xf32>
    %117 = vector.multi_reduction <add>, %116, %cst_40 [1] : vector<16x16xf32> to vector<16xf32>
    %118 = vector.shape_cast %117 : vector<16xf32> to vector<16x1xf32>
    %119 = tpu.reciprocal %118 {approx = true} : vector<16x1xf32> -> vector<16x1xf32>
    %120 = vector.broadcast %119 : vector<16x1xf32> to vector<16x16xf32>
    %121 = arith.mulf %116, %120 : vector<16x16xf32>
    %122 = arith.truncf %121 : vector<16x16xf32> to vector<16x16xbf16>
    %cst_41 = arith.constant dense<0.000000e+00> : vector<16x16xf32>
    %123 = tpu.matmul %122, %110, %cst_41 {dimension_numbers = #tpu.dot_dimension_numbers<[1], [0], [0], [1], [0, 0, 1, 1], [], []>} : vector<16x16xbf16>, vector<16x16xbf16>, vector<16x16xf32> -> vector<16x16xf32>
    %c0_42 = arith.constant 0 : index
    %c48 = arith.constant 48 : index
    %124 = vector.load %arg14[%c0_42, %c48] : memref<16x64xf32, #tpu.memory_space<vmem>>, vector<16x16xf32>
    tpu.vector_store %arg14[%c0_42, %c48], %123 {strides = array<i32>} : memref<16x64xf32, #tpu.memory_space<vmem>>, vector<16x16xf32>,
    %c0_43 = arith.constant 0 : index
    %c0_44 = arith.constant 0 : index
    %125 = vector.load %arg14[%c0_43, %c0_44] : memref<16x64xf32, #tpu.memory_space<vmem>>, vector<16x64xf32>
    %126 = arith.truncf %125 : vector<16x64xf32> to vector<16x64xbf16>
    %c0_45 = arith.constant 0 : index
    %c0_46 = arith.constant 0 : index
    %127 = vector.load %arg7[%c0_45, %c0_46] : memref<64x64xbf16, #tpu.memory_space<vmem>>, vector<64x64xbf16>
    %cst_47 = arith.constant dense<0.000000e+00> : vector<16x64xf32>
    %128 = tpu.matmul %126, %127, %cst_47 {dimension_numbers = #tpu.dot_dimension_numbers<[1], [0], [0], [1], [0, 0, 1, 1], [], []>} : vector<16x64xbf16>, vector<64x64xbf16>, vector<16x64xf32> -> vector<16x64xf32>
    %c0_48 = arith.constant 0 : index
    %c0_49 = arith.constant 0 : index
    %129 = vector.load %arg8[%c0_48, %c0_49] : memref<1x64xf32, #tpu.memory_space<vmem>>, vector<1x64xf32>
    %130 = vector.broadcast %129 : vector<1x64xf32> to vector<16x64xf32>
    %131 = arith.addf %128, %130 : vector<16x64xf32>
    %132 = vector.broadcast %17 : vector<1x64xf32> to vector<16x64xf32>
    %133 = arith.mulf %132, %131 : vector<16x64xf32>
    %134 = arith.addf %1, %133 : vector<16x64xf32>
    %cst_50 = arith.constant dense<0.000000e+00> : vector<16xf32>
    %135 = vector.multi_reduction <add>, %134, %cst_50 [1] : vector<16x64xf32> to vector<16xf32>
    %136 = vector.shape_cast %135 : vector<16xf32> to vector<16x1xf32>
    %cst_51 = arith.constant 6.400000e+01 : f32
    %137 = vector.broadcast %cst_51 : f32 to vector<16x1xf32>
    %138 = arith.divf %136, %137 : vector<16x1xf32>
    %139 = vector.broadcast %138 : vector<16x1xf32> to vector<16x64xf32>
    %140 = arith.subf %134, %139 : vector<16x64xf32>
    %141 = arith.mulf %140, %140 : vector<16x64xf32>
    %cst_52 = arith.constant dense<0.000000e+00> : vector<16xf32>
    %142 = vector.multi_reduction <add>, %141, %cst_52 [1] : vector<16x64xf32> to vector<16xf32>
    %143 = vector.shape_cast %142 : vector<16xf32> to vector<16x1xf32>
    %cst_53 = arith.constant 6.400000e+01 : f32
    %144 = vector.broadcast %cst_53 : f32 to vector<16x1xf32>
    %145 = arith.divf %143, %144 : vector<16x1xf32>
    %cst_54 = arith.constant 9.99999997E-7 : f32
    %146 = vector.broadcast %cst_54 : f32 to vector<16x1xf32>
    %147 = arith.addf %145, %146 : vector<16x1xf32>
    %148 = math.rsqrt %147 : vector<16x1xf32>
    %149 = vector.broadcast %148 : vector<16x1xf32> to vector<16x64xf32>
    %150 = arith.mulf %140, %149 : vector<16x64xf32>
    %cst_55 = arith.constant 1.000000e+00 : f32
    %151 = vector.broadcast %cst_55 : f32 to vector<1x64xf32>
    %152 = arith.addf %151, %19 : vector<1x64xf32>
    %153 = vector.broadcast %152 : vector<1x64xf32> to vector<16x64xf32>
    %154 = arith.mulf %150, %153 : vector<16x64xf32>
    %155 = vector.broadcast %18 : vector<1x64xf32> to vector<16x64xf32>
    %156 = arith.addf %154, %155 : vector<16x64xf32>
    %157 = arith.truncf %156 : vector<16x64xf32> to vector<16x64xbf16>
    %c0_56 = arith.constant 0 : index
    %c0_57 = arith.constant 0 : index
    %158 = vector.load %arg9[%c0_56, %c0_57] : memref<64x256xbf16, #tpu.memory_space<vmem>>, vector<64x256xbf16>
    %cst_58 = arith.constant dense<0.000000e+00> : vector<16x256xf32>
    %159 = tpu.matmul %157, %158, %cst_58 {dimension_numbers = #tpu.dot_dimension_numbers<[1], [0], [0], [1], [0, 0, 1, 1], [], []>} : vector<16x64xbf16>, vector<64x256xbf16>, vector<16x256xf32> -> vector<16x256xf32>
    %c0_59 = arith.constant 0 : index
    %c0_60 = arith.constant 0 : index
    %160 = vector.load %arg10[%c0_59, %c0_60] : memref<1x256xf32, #tpu.memory_space<vmem>>, vector<1x256xf32>
    %161 = vector.broadcast %160 : vector<1x256xf32> to vector<16x256xf32>
    %162 = arith.addf %159, %161 : vector<16x256xf32>
    %cst_61 = arith.constant 5.000000e-01 : f32
    %163 = vector.broadcast %cst_61 : f32 to vector<16x256xf32>
    %164 = arith.mulf %163, %162 : vector<16x256xf32>
    %cst_62 = arith.constant 4.471500e-02 : f32
    %165 = vector.broadcast %cst_62 : f32 to vector<16x256xf32>
    %166 = arith.mulf %165, %162 : vector<16x256xf32>
    %167 = arith.mulf %166, %162 : vector<16x256xf32>
    %168 = arith.mulf %167, %162 : vector<16x256xf32>
    %169 = arith.addf %162, %168 : vector<16x256xf32>
    %cst_63 = arith.constant 0.797884583 : f32
    %170 = vector.broadcast %cst_63 : f32 to vector<16x256xf32>
    %171 = arith.mulf %170, %169 : vector<16x256xf32>
    %172 = math.tanh %171 : vector<16x256xf32>
    %cst_64 = arith.constant 1.000000e+00 : f32
    %173 = vector.broadcast %cst_64 : f32 to vector<16x256xf32>
    %174 = arith.addf %173, %172 : vector<16x256xf32>
    %175 = arith.mulf %164, %174 : vector<16x256xf32>
    %176 = arith.truncf %175 : vector<16x256xf32> to vector<16x256xbf16>
    %c0_65 = arith.constant 0 : index
    %c0_66 = arith.constant 0 : index
    %177 = vector.load %arg11[%c0_65, %c0_66] : memref<256x64xbf16, #tpu.memory_space<vmem>>, vector<256x64xbf16>
    %cst_67 = arith.constant dense<0.000000e+00> : vector<16x64xf32>
    %178 = tpu.matmul %176, %177, %cst_67 {dimension_numbers = #tpu.dot_dimension_numbers<[1], [0], [0], [1], [0, 0, 1, 1], [], []>} : vector<16x256xbf16>, vector<256x64xbf16>, vector<16x64xf32> -> vector<16x64xf32>
    %c0_68 = arith.constant 0 : index
    %c0_69 = arith.constant 0 : index
    %179 = vector.load %arg12[%c0_68, %c0_69] : memref<1x64xf32, #tpu.memory_space<vmem>>, vector<1x64xf32>
    %180 = vector.broadcast %179 : vector<1x64xf32> to vector<16x64xf32>
    %181 = arith.addf %178, %180 : vector<16x64xf32>
    %182 = vector.broadcast %20 : vector<1x64xf32> to vector<16x64xf32>
    %183 = arith.mulf %182, %181 : vector<16x64xf32>
    %184 = arith.addf %134, %183 : vector<16x64xf32>
    %c0_70 = arith.constant 0 : index
    %c0_71 = arith.constant 0 : index
    %c0_72 = arith.constant 0 : index
    %185 = vector.load %arg13[%c0_70, %c0_71, %c0_72] : memref<1x16x64xf32, #tpu.memory_space<vmem>>, vector<1x16x64xf32>
    %186 = vector.shape_cast %185 : vector<1x16x64xf32> to vector<16x64xf32>
    %187 = vector.shape_cast %184 : vector<16x64xf32> to vector<1x16x64xf32>
    tpu.vector_store %arg13[%c0_70, %c0_71, %c0_72], %187 {strides = array<i32>} : memref<1x16x64xf32, #tpu.memory_space<vmem>>, vector<1x16x64xf32>,
    return
  }
  func.func @transform_0(%arg0: i32) -> (i32, i32, i32) {
    %c0_i32 = arith.constant 0 : i32
    %c0_i32_0 = arith.constant 0 : i32
    %c0_i32_1 = arith.constant 0 : i32
    return %arg0, %c0_i32, %c0_i32_0 : i32, i32, i32
  }
  func.func @transform_1(%arg0: i32) -> (i32, i32, i32) {
    %c0_i32 = arith.constant 0 : i32
    %c0_i32_0 = arith.constant 0 : i32
    %c0_i32_1 = arith.constant 0 : i32
    return %arg0, %c0_i32, %c0_i32_0 : i32, i32, i32
  }
  func.func @transform_2(%arg0: i32) -> (i32, i32) {
    %c0_i32 = arith.constant 0 : i32
    %c0_i32_0 = arith.constant 0 : i32
    %c0_i32_1 = arith.constant 0 : i32
    return %c0_i32, %c0_i32_0 : i32, i32
  }
  func.func @transform_3(%arg0: i32) -> (i32, i32) {
    %c0_i32 = arith.constant 0 : i32
    %c0_i32_0 = arith.constant 0 : i32
    %c0_i32_1 = arith.constant 0 : i32
    return %c0_i32, %c0_i32_0 : i32, i32
  }
  func.func @transform_4(%arg0: i32) -> (i32, i32) {
    %c0_i32 = arith.constant 0 : i32
    %c0_i32_0 = arith.constant 0 : i32
    %c0_i32_1 = arith.constant 0 : i32
    return %c0_i32, %c0_i32_0 : i32, i32
  }
  func.func @transform_5(%arg0: i32) -> (i32, i32) {
    %c0_i32 = arith.constant 0 : i32
    %c0_i32_0 = arith.constant 0 : i32
    %c0_i32_1 = arith.constant 0 : i32
    return %c0_i32, %c0_i32_0 : i32, i32
  }
  func.func @transform_6(%arg0: i32) -> (i32, i32) {
    %c0_i32 = arith.constant 0 : i32
    %c0_i32_0 = arith.constant 0 : i32
    %c0_i32_1 = arith.constant 0 : i32
    return %c0_i32, %c0_i32_0 : i32, i32
  }
  func.func @transform_7(%arg0: i32) -> (i32, i32) {
    %c0_i32 = arith.constant 0 : i32
    %c0_i32_0 = arith.constant 0 : i32
    %c0_i32_1 = arith.constant 0 : i32
    return %c0_i32, %c0_i32_0 : i32, i32
  }
  func.func @transform_8(%arg0: i32) -> (i32, i32) {
    %c0_i32 = arith.constant 0 : i32
    %c0_i32_0 = arith.constant 0 : i32
    %c0_i32_1 = arith.constant 0 : i32
    return %c0_i32, %c0_i32_0 : i32, i32
  }
  func.func @transform_9(%arg0: i32) -> (i32, i32) {
    %c0_i32 = arith.constant 0 : i32
    %c0_i32_0 = arith.constant 0 : i32
    %c0_i32_1 = arith.constant 0 : i32
    return %c0_i32, %c0_i32_0 : i32, i32
  }
  func.func @transform_10(%arg0: i32) -> (i32, i32) {
    %c0_i32 = arith.constant 0 : i32
    %c0_i32_0 = arith.constant 0 : i32
    %c0_i32_1 = arith.constant 0 : i32
    return %c0_i32, %c0_i32_0 : i32, i32
  }
  func.func @transform_11(%arg0: i32) -> (i32, i32) {
    %c0_i32 = arith.constant 0 : i32
    %c0_i32_0 = arith.constant 0 : i32
    %c0_i32_1 = arith.constant 0 : i32
    return %c0_i32, %c0_i32_0 : i32, i32
  }
  func.func @transform_12(%arg0: i32) -> (i32, i32, i32) {
    %c0_i32 = arith.constant 0 : i32
    %c0_i32_0 = arith.constant 0 : i32
    %c0_i32_1 = arith.constant 0 : i32
    return %arg0, %c0_i32, %c0_i32_0 : i32, i32, i32
  }
}

</mosaic_0001>

<llo_original>
// kernel: tpu_custom_call.1
$region0: #{tpu_custom_call.1}
  #allocation0 [shape = 'u32[]', space=smem, size = 0x4, offset = 0x4, fixed_abs, tag = 'smem constant byte address 0x4 - core index']
  #allocation1 [shape = 'u32[144,128]{1,0:T(1,128)}', space=vmem, size = 0x12000, scoped, tag = 'internal scratch']
  #allocation2 [shape = 'f32[16,64]{1,0:T(8,128)}', space=vmem, size = 0x2000, scoped, tag = 'scratch operand']
  %s0 = inlined_call_operand.hbm [shape: f32[2,1,64], index: 0, kind: input, shape index: {}]
  %s1 = inlined_call_operand.vmem [shape: f32[2,16,64], index: 1, kind: input, shape index: {}]
  %s2 = inlined_call_operand.vmem [shape: bf16[64,384], index: 2, kind: input, shape index: {}]
  %s3 = inlined_call_operand.vmem [shape: f32[1,384], index: 3, kind: input, shape index: {}]
  %s4 = inlined_call_operand.vmem [shape: bf16[64,192], index: 4, kind: input, shape index: {}]
  %s5 = inlined_call_operand.vmem [shape: f32[1,192], index: 5, kind: input, shape index: {}]
  %s6 = inlined_call_operand.hbm [shape: bf16[64,64], index: 6, kind: input, shape index: {}]
  %s7 = inlined_call_operand.vmem [shape: f32[1,64], index: 7, kind: input, shape index: {}]
  %s8 = inlined_call_operand.hbm [shape: bf16[64,256], index: 8, kind: input, shape index: {}]
  %s9 = inlined_call_operand.vmem [shape: f32[1,256], index: 9, kind: input, shape index: {}]
  %s10 = inlined_call_operand.vmem [shape: bf16[256,64], index: 10, kind: input, shape index: {}]
  %s11 = inlined_call_operand.vmem [shape: f32[1,64], index: 11, kind: input, shape index: {}]
  %s12 = inlined_call_operand.hbm [shape: f32[2,16,64], index: 12, kind: output, shape index: {}]
  %s13 = sld [smem:[#allocation0]]
  $region93: #{tpu_custom_call.1} parent=0
    _
  %s15 = ssub.s32 1, %s13
  %s16 = scalar_select 0, %s15, %s13
  $region1: #{tpu_custom_call.1} parent=0
    #allocation3 [shape = 'u8[1024]{0}', space=vmem, size = 0x400, scoped, tag = 'input window, operand 0']
    #allocation4 [shape = 's32[2]{0}', space=sflag, size = 0x8, scoped, tag = 'scoped memory for tpu_custom_call.1']
    #allocation5 [shape = 's32[2]{0}', space=sflag, size = 0x8, scoped, tag = 'scoped memory for tpu_custom_call.1']
    #allocation6 [shape = 'u8[16384]{0}', space=vmem, size = 0x4000, scoped, tag = 'input window, operand 6, single buffered']
    #allocation7 [shape = 's32[1]{0}', space=sflag, size = 0x4, scoped, tag = 'scoped memory for tpu_custom_call.1']
    #allocation8 [shape = 'u8[32768]{0}', space=vmem, size = 0x8000, scoped, tag = 'input window, operand 8, single buffered']
    #allocation9 [shape = 'u8[16384]{0}', space=vmem, size = 0x4000, scoped, tag = 'output window, operand 0']
    %17 = vsyncpa [#allocation4], 0
    %s18 = scalar_lea.sflag [#allocation4], 1
    %19 = vsyncpa %s18, 0
    %20 = vsyncpa [#allocation7], 0
    %21 = vsyncpa [#allocation5], 0
    %s22 = scalar_lea.sflag [#allocation5], 1
    %23 = vsyncpa %s22, 0
    loop: start=0, step=1, limit=4
    $region2: #{tpu_custom_call.1} parent=1 // loop_pre_header
      _
    $region3: #{tpu_custom_call.1} parent=1 // loop_header
      %s25 = sphi 0, %s29
      %p26 = scmp.ge.s32.totalorder %s25, 4
      %s35 = sphi 0, %s37
      %s38 = sphi 0, %s35
      %s39 = sphi 0, %s38
      %s55 = sphi 0, %s39
      %s61 = sphi 0, %s63
      %s64 = sphi 0, %s61
      %s65 = sphi 0, %s64
      %s81 = sphi 0, %s65
      %s85 = sphi 0, %s85
      %s87 = sphi 0, %s85
      %s88 = sphi 0, %s87
      %s102 = sphi 0, %s88
      %s106 = sphi 0, %s106
      %s108 = sphi 0, %s106
      %s109 = sphi 0, %s108
      %s123 = sphi 0, %s109
      %s127 = sphi 0, %s127
      %s129 = sphi 0, %s127
      %s130 = sphi 0, %s129
      %s144 = sphi 0, %s130
      %s148 = sphi 0, %s148
      %s150 = sphi 0, %s148
      %s151 = sphi 0, %s150
      %s165 = sphi 0, %s151
      %s169 = sphi 0, %s169
      %s171 = sphi 0, %s169
      %s172 = sphi 0, %s171
      %s186 = sphi 0, %s172
      %s190 = sphi 0, %s190
      %s192 = sphi 0, %s190
      %s193 = sphi 0, %s192
      %s207 = sphi 0, %s193
      %s211 = sphi 0, %s211
      %s213 = sphi 0, %s211
      %s214 = sphi 0, %s213
      %s228 = sphi 0, %s214
      %s232 = sphi 0, %s232
      %s234 = sphi 0, %s232
      %s235 = sphi 0, %s234
      %s249 = sphi 0, %s235
      %s253 = sphi 0, %s253
      %s255 = sphi 0, %s253
      %s256 = sphi 0, %s255
      %s270 = sphi 0, %s256
      %s274 = sphi 0, %s274
      %s276 = sphi 0, %s274
      %s277 = sphi 0, %s276
      %s291 = sphi 0, %s277
      %s297 = sphi 0, %s299
      %s300 = sphi 0, %s297
      %s301 = sphi 0, %s300
      %s317 = sphi 0, %s301
    $region4: #{tpu_custom_call.1} parent=1 // loop_header_branch
      %28 = sbr.rel (%p26) target = $region8
    $region5: #{tpu_custom_call.1} parent=1 // loop_body
      %s30 = ssub.s32 %s25, 1
      %s31 = ssub.s32 %s25, 2
      %s32 = sadd.s32 %s25, 1
      %s33 = ssub.s32 %s25, %s32
      %p34 = scmp.eq.s32.totalorder %s33, 0
      %s36 = sadd.s32 %s35, 1
      %s37 = scalar_select %p34, %s35, %s36
      %p40 = pneg %p34
      %p41 = scmp.eq.s32.totalorder %s25, 1
      %p42 = por %p40, %p41
      %p43 = scmp.ne.s32.totalorder %s35, %s38
      %p44 = scmp.eq.s32.totalorder %s25, 0
      %p45 = por %p43, %p44
      %p46 = scmp.ne.s32.totalorder %s35, %s38
      %p47 = scmp.eq.s32.totalorder %s30, 1
      %p48 = por %p46, %p47
      %p49 = scmp.ne.s32.totalorder %s38, %s39
      %p50 = scmp.eq.s32.totalorder %s30, 0
      %p51 = por %p49, %p50
      %p52 = scmp.ne.s32.totalorder %s38, %s39
      %p53 = scmp.eq.s32.totalorder %s31, 1
      %p54 = por %p52, %p53
      %p56 = scmp.ne.s32.totalorder %s39, %s55
      %p57 = scmp.eq.s32.totalorder %s31, 0
      %p58 = por %p56, %p57
      %s59 = ssub.s32 %s25, %s32
      %p60 = scmp.eq.s32.totalorder %s59, 0
      %s62 = sadd.s32 %s61, 1
      %s63 = scalar_select %p60, %s61, %s62
      %p66 = pneg %p60
      %p67 = scmp.eq.s32.totalorder %s25, 1
      %p68 = por %p66, %p67
      %p69 = scmp.ne.s32.totalorder %s61, %s64
      %p70 = scmp.eq.s32.totalorder %s25, 0
      %p71 = por %p69, %p70
      %p72 = scmp.ne.s32.totalorder %s61, %s64
      %p73 = scmp.eq.s32.totalorder %s30, 1
      %p74 = por %p72, %p73
      %p75 = scmp.ne.s32.totalorder %s64, %s65
      %p76 = scmp.eq.s32.totalorder %s30, 0
      %p77 = por %p75, %p76
      %p78 = scmp.ne.s32.totalorder %s64, %s65
      %p79 = scmp.eq.s32.totalorder %s31, 1
      %p80 = por %p78, %p79
      %p82 = scmp.ne.s32.totalorder %s65, %s81
      %p83 = scmp.eq.s32.totalorder %s31, 0
      %p84 = por %p82, %p83
      %s86 = sadd.s32 %s85, 1
      %p89 = scmp.eq.s32.totalorder %s25, 1
      %p90 = scmp.ne.s32.totalorder %s85, %s87
      %p91 = scmp.eq.s32.totalorder %s25, 0
      %p92 = por %p90, %p91
      %p93 = scmp.ne.s32.totalorder %s85, %s87
      %p94 = scmp.eq.s32.totalorder %s30, 1
      %p95 = por %p93, %p94
      %p96 = scmp.ne.s32.totalorder %s87, %s88
      %p97 = scmp.eq.s32.totalorder %s30, 0
      %p98 = por %p96, %p97
      %p99 = scmp.ne.s32.totalorder %s87, %s88
      %p100 = scmp.eq.s32.totalorder %s31, 1
      %p101 = por %p99, %p100
      %p103 = scmp.ne.s32.totalorder %s88, %s102
      %p104 = scmp.eq.s32.totalorder %s31, 0
      %p105 = por %p103, %p104
      %s107 = sadd.s32 %s106, 1
      %p110 = scmp.eq.s32.totalorder %s25, 1
      %p111 = scmp.ne.s32.totalorder %s106, %s108
      %p112 = scmp.eq.s32.totalorder %s25, 0
      %p113 = por %p111, %p112
      %p114 = scmp.ne.s32.totalorder %s106, %s108
      %p115 = scmp.eq.s32.totalorder %s30, 1
      %p116 = por %p114, %p115
      %p117 = scmp.ne.s32.totalorder %s108, %s109
      %p118 = scmp.eq.s32.totalorder %s30, 0
      %p119 = por %p117, %p118
      %p120 = scmp.ne.s32.totalorder %s108, %s109
      %p121 = scmp.eq.s32.totalorder %s31, 1
      %p122 = por %p120, %p121
      %p124 = scmp.ne.s32.totalorder %s109, %s123
      %p125 = scmp.eq.s32.totalorder %s31, 0
      %p126 = por %p124, %p125
      %s128 = sadd.s32 %s127, 1
      %p131 = scmp.eq.s32.totalorder %s25, 1
      %p132 = scmp.ne.s32.totalorder %s127, %s129
      %p133 = scmp.eq.s32.totalorder %s25, 0
      %p134 = por %p132, %p133
      %p135 = scmp.ne.s32.totalorder %s127, %s129
      %p136 = scmp.eq.s32.totalorder %s30, 1
      %p137 = por %p135, %p136
      %p138 = scmp.ne.s32.totalorder %s129, %s130
      %p139 = scmp.eq.s32.totalorder %s30, 0
      %p140 = por %p138, %p139
      %p141 = scmp.ne.s32.totalorder %s129, %s130
      %p142 = scmp.eq.s32.totalorder %s31, 1
      %p143 = por %p141, %p142
      %p145 = scmp.ne.s32.totalorder %s130, %s144
      %p146 = scmp.eq.s32.totalorder %s31, 0
      %p147 = por %p145, %p146
      %s149 = sadd.s32 %s148, 1
      %p152 = scmp.eq.s32.totalorder %s25, 1
      %p153 = scmp.ne.s32.totalorder %s148, %s150
      %p154 = scmp.eq.s32.totalorder %s25, 0
      %p155 = por %p153, %p154
      %p156 = scmp.ne.s32.totalorder %s148, %s150
      %p157 = scmp.eq.s32.totalorder %s30, 1
      %p158 = por %p156, %p157
      %p159 = scmp.ne.s32.totalorder %s150, %s151
      %p160 = scmp.eq.s32.totalorder %s30, 0
      %p161 = por %p159, %p160
      %p162 = scmp.ne.s32.totalorder %s150, %s151
      %p163 = scmp.eq.s32.totalorder %s31, 1
      %p164 = por %p162, %p163
      %p166 = scmp.ne.s32.totalorder %s151, %s165
      %p167 = scmp.eq.s32.totalorder %s31, 0
      %p168 = por %p166, %p167
      %s170 = sadd.s32 %s169, 1
      %p173 = scmp.eq.s32.totalorder %s25, 1
      %p174 = scmp.ne.s32.totalorder %s169, %s171
      %p175 = scmp.eq.s32.totalorder %s25, 0
      %p176 = por %p174, %p175
      %p177 = scmp.ne.s32.totalorder %s169, %s171
      %p178 = scmp.eq.s32.totalorder %s30, 1
      %p179 = por %p177, %p178
      %p180 = scmp.ne.s32.totalorder %s171, %s172
      %p181 = scmp.eq.s32.totalorder %s30, 0
      %p182 = por %p180, %p181
      %p183 = scmp.ne.s32.totalorder %s171, %s172
      %p184 = scmp.eq.s32.totalorder %s31, 1
      %p185 = por %p183, %p184
      %p187 = scmp.ne.s32.totalorder %s172, %s186
      %p188 = scmp.eq.s32.totalorder %s31, 0
      %p189 = por %p187, %p188
      %s191 = sadd.s32 %s190, 1
      %p194 = scmp.eq.s32.totalorder %s25, 1
      %p195 = scmp.ne.s32.totalorder %s190, %s192
      %p196 = scmp.eq.s32.totalorder %s25, 0
      %p197 = por %p195, %p196
      %p198 = scmp.ne.s32.totalorder %s190, %s192
      %p199 = scmp.eq.s32.totalorder %s30, 1
      %p200 = por %p198, %p199
      %p201 = scmp.ne.s32.totalorder %s192, %s193
      %p202 = scmp.eq.s32.totalorder %s30, 0
      %p203 = por %p201, %p202
      %p204 = scmp.ne.s32.totalorder %s192, %s193
      %p205 = scmp.eq.s32.totalorder %s31, 1
      %p206 = por %p204, %p205
      %p208 = scmp.ne.s32.totalorder %s193, %s207
      %p209 = scmp.eq.s32.totalorder %s31, 0
      %p210 = por %p208, %p209
      %s212 = sadd.s32 %s211, 1
      %p215 = scmp.eq.s32.totalorder %s25, 1
      %p216 = scmp.ne.s32.totalorder %s211, %s213
      %p217 = scmp.eq.s32.totalorder %s25, 0
      %p218 = por %p216, %p217
      %p219 = scmp.ne.s32.totalorder %s211, %s213
      %p220 = scmp.eq.s32.totalorder %s30, 1
      %p221 = por %p219, %p220
      %p222 = scmp.ne.s32.totalorder %s213, %s214
      %p223 = scmp.eq.s32.totalorder %s30, 0
      %p224 = por %p222, %p223
      %p225 = scmp.ne.s32.totalorder %s213, %s214
      %p226 = scmp.eq.s32.totalorder %s31, 1
      %p227 = por %p225, %p226
      %p229 = scmp.ne.s32.totalorder %s214, %s228
      %p230 = scmp.eq.s32.totalorder %s31, 0
      %p231 = por %p229, %p230
      %s233 = sadd.s32 %s232, 1
      %p236 = scmp.eq.s32.totalorder %s25, 1
      %p237 = scmp.ne.s32.totalorder %s232, %s234
      %p238 = scmp.eq.s32.totalorder %s25, 0
      %p239 = por %p237, %p238
      %p240 = scmp.ne.s32.totalorder %s232, %s234
      %p241 = scmp.eq.s32.totalorder %s30, 1
      %p242 = por %p240, %p241
      %p243 = scmp.ne.s32.totalorder %s234, %s235
      %p244 = scmp.eq.s32.totalorder %s30, 0
      %p245 = por %p243, %p244
      %p246 = scmp.ne.s32.totalorder %s234, %s235
      %p247 = scmp.eq.s32.totalorder %s31, 1
      %p248 = por %p246, %p247
      %p250 = scmp.ne.s32.totalorder %s235, %s249
      %p251 = scmp.eq.s32.totalorder %s31, 0
      %p252 = por %p250, %p251
      %s254 = sadd.s32 %s253, 1
      %p257 = scmp.eq.s32.totalorder %s25, 1
      %p258 = scmp.ne.s32.totalorder %s253, %s255
      %p259 = scmp.eq.s32.totalorder %s25, 0
      %p260 = por %p258, %p259
      %p261 = scmp.ne.s32.totalorder %s253, %s255
      %p262 = scmp.eq.s32.totalorder %s30, 1
      %p263 = por %p261, %p262
      %p264 = scmp.ne.s32.totalorder %s255, %s256
      %p265 = scmp.eq.s32.totalorder %s30, 0
      %p266 = por %p264, %p265
      %p267 = scmp.ne.s32.totalorder %s255, %s256
      %p268 = scmp.eq.s32.totalorder %s31, 1
      %p269 = por %p267, %p268
      %p271 = scmp.ne.s32.totalorder %s256, %s270
      %p272 = scmp.eq.s32.totalorder %s31, 0
      %p273 = por %p271, %p272
      %s275 = sadd.s32 %s274, 1
      %p278 = scmp.eq.s32.totalorder %s25, 1
      %p279 = scmp.ne.s32.totalorder %s274, %s276
      %p280 = scmp.eq.s32.totalorder %s25, 0
      %p281 = por %p279, %p280
      %p282 = scmp.ne.s32.totalorder %s274, %s276
      %p283 = scmp.eq.s32.totalorder %s30, 1
      %p284 = por %p282, %p283
      %p285 = scmp.ne.s32.totalorder %s276, %s277
      %p286 = scmp.eq.s32.totalorder %s30, 0
      %p287 = por %p285, %p286
      %p288 = scmp.ne.s32.totalorder %s276, %s277
      %p289 = scmp.eq.s32.totalorder %s31, 1
      %p290 = por %p288, %p289
      %p292 = scmp.ne.s32.totalorder %s277, %s291
      %p293 = scmp.eq.s32.totalorder %s31, 0
      %p294 = por %p292, %p293
      %s295 = ssub.s32 %s25, %s32
      %p296 = scmp.eq.s32.totalorder %s295, 0
      %s298 = sadd.s32 %s297, 1
      %s299 = scalar_select %p296, %s297, %s298
      %p302 = pneg %p296
      %p303 = scmp.eq.s32.totalorder %s25, 1
      %p304 = por %p302, %p303
      %p305 = scmp.ne.s32.totalorder %s297, %s300
      %p306 = scmp.eq.s32.totalorder %s25, 0
      %p307 = por %p305, %p306
      %p308 = scmp.ne.s32.totalorder %s297, %s300
      %p309 = scmp.eq.s32.totalorder %s30, 1
      %p310 = por %p308, %p309
      %p311 = scmp.ne.s32.totalorder %s300, %s301
      %p312 = scmp.eq.s32.totalorder %s30, 0
      %p313 = por %p311, %p312
      %p314 = scmp.ne.s32.totalorder %s300, %s301
      %p315 = scmp.eq.s32.totalorder %s31, 1
      %p316 = por %p314, %p315
      %p318 = scmp.ne.s32.totalorder %s301, %s317
      %p319 = scmp.eq.s32.totalorder %s31, 0
      %p320 = por %p318, %p319
      %p321 = scmp.le.s32.totalorder 1, %s25
      %p322 = scmp.lt.s32.totalorder %s25, 3
      %p323 = pnand %p321, %p322
      %p324 = pneg %p323
      // Predicated region
      $region9: #{tpu_custom_call.1} parent=5 // pred_check
        _
      $region10: #{tpu_custom_call.1} parent=5 // pred_check_branch
        %326 = sbr.rel (%p323) target = $region12
      $region11: #{tpu_custom_call.1} parent=5 // pred_region
        %s327 = ssub.s32 %s25, 1
        // Predicated region
        $region13: #{tpu_custom_call.1} parent=11 // pred_check
          %p328 = pneg %p98
        $region14: #{tpu_custom_call.1} parent=11 // pred_check_branch
          %330 = sbr.rel (%p328) target = $region16
        $region15: #{tpu_custom_call.1} parent=11 // pred_region
          _
        $region16: #{tpu_custom_call.1} parent=11 // pred_fallthru
          _
        // Predicated region
        $region17: #{tpu_custom_call.1} parent=11 // pred_check
          %p331 = pneg %p119
        $region18: #{tpu_custom_call.1} parent=11 // pred_check_branch
          %333 = sbr.rel (%p331) target = $region20
        $region19: #{tpu_custom_call.1} parent=11 // pred_region
          _
        $region20: #{tpu_custom_call.1} parent=11 // pred_fallthru
          _
        // Predicated region
        $region21: #{tpu_custom_call.1} parent=11 // pred_check
          %p334 = pneg %p140
        $region22: #{tpu_custom_call.1} parent=11 // pred_check_branch
          %336 = sbr.rel (%p334) target = $region24
        $region23: #{tpu_custom_call.1} parent=11 // pred_region
          _
        $region24: #{tpu_custom_call.1} parent=11 // pred_fallthru
          _
        // Predicated region
        $region25: #{tpu_custom_call.1} parent=11 // pred_check
          %p337 = pneg %p161
        $region26: #{tpu_custom_call.1} parent=11 // pred_check_branch
          %339 = sbr.rel (%p337) target = $region28
        $region27: #{tpu_custom_call.1} parent=11 // pred_region
          _
        $region28: #{tpu_custom_call.1} parent=11 // pred_fallthru
          _
        // Predicated region
        $region29: #{tpu_custom_call.1} parent=11 // pred_check
          %p340 = pneg %p182
        $region30: #{tpu_custom_call.1} parent=11 // pred_check_branch
          %342 = sbr.rel (%p340) target = $region32
        $region31: #{tpu_custom_call.1} parent=11 // pred_region
          %s344 = ssub.s32 512, 512
          %345 = vsyncadd [#allocation7], %s344
          %s346 = sshll.u32 [#allocation6], 4
          %s347 = int_to_ptr.vmem [resolvable:$true] %s346
          %352 = dma.hbm_to_vmem [thread:$0]  %s6, 512, %s347, [#allocation7], 64, 64, 4
        $region32: #{tpu_custom_call.1} parent=11 // pred_fallthru
          _
        // Predicated region
        $region33: #{tpu_custom_call.1} parent=11 // pred_check
          %p353 = pneg %p203
        $region34: #{tpu_custom_call.1} parent=11 // pred_check_branch
          %355 = sbr.rel (%p353) target = $region36
        $region35: #{tpu_custom_call.1} parent=11 // pred_region
          _
        $region36: #{tpu_custom_call.1} parent=11 // pred_fallthru
          _
        // Predicated region
        $region37: #{tpu_custom_call.1} parent=11 // pred_check
          %p356 = pneg %p224
        $region38: #{tpu_custom_call.1} parent=11 // pred_check_branch
          %358 = sbr.rel (%p356) target = $region40
        $region39: #{tpu_custom_call.1} parent=11 // pred_region
          %s360 = ssub.s32 1024, 1024
          %361 = vsyncadd [#allocation7], %s360
          %s362 = sshll.u32 [#allocation8], 4
          %s363 = int_to_ptr.vmem [resolvable:$true] %s362
          %368 = dma.hbm_to_vmem [thread:$0]  %s8, 1024, %s363, [#allocation7], 128, 128, 8
        $region40: #{tpu_custom_call.1} parent=11 // pred_fallthru
          _
        // Predicated region
        $region41: #{tpu_custom_call.1} parent=11 // pred_check
          %p369 = pneg %p245
        $region42: #{tpu_custom_call.1} parent=11 // pred_check_branch
          %371 = sbr.rel (%p369) target = $region44
        $region43: #{tpu_custom_call.1} parent=11 // pred_region
          _
        $region44: #{tpu_custom_call.1} parent=11 // pred_fallthru
          _
        // Predicated region
        $region45: #{tpu_custom_call.1} parent=11 // pred_check
          %p372 = pneg %p266
        $region46: #{tpu_custom_call.1} parent=11 // pred_check_branch
          %374 = sbr.rel (%p372) target = $region48
        $region47: #{tpu_custom_call.1} parent=11 // pred_region
          _
        $region48: #{tpu_custom_call.1} parent=11 // pred_fallthru
          _
        // Predicated region
        $region49: #{tpu_custom_call.1} parent=11 // pred_check
          %p375 = pneg %p287
        $region50: #{tpu_custom_call.1} parent=11 // pred_check_branch
          %377 = sbr.rel (%p375) target = $region52
        $region51: #{tpu_custom_call.1} parent=11 // pred_region
          _
        $region52: #{tpu_custom_call.1} parent=11 // pred_fallthru
          _
      $region12: #{tpu_custom_call.1} parent=5 // pred_fallthru
        _
      %p378 = scmp.lt.s32.totalorder %s25, 2
      // Predicated region
      $region53: #{tpu_custom_call.1} parent=5 // pred_check
        %p379 = pneg %p378
      $region54: #{tpu_custom_call.1} parent=5 // pred_check_branch
        %381 = sbr.rel (%p379) target = $region56
      $region55: #{tpu_custom_call.1} parent=5 // pred_region
        // Predicated region
        $region57: #{tpu_custom_call.1} parent=55 // pred_check
          %p382 = pneg %p45
        $region58: #{tpu_custom_call.1} parent=55 // pred_check_branch
          %384 = sbr.rel (%p382) target = $region60
        $region59: #{tpu_custom_call.1} parent=55 // pred_region
          %s385 = sand.u32 %s35, 1
          %s386 = scalar_lea.sflag [#allocation4], %s385
          %s387 = sand.u32 %s35, 1
          %s388 = scalar_lea.vmem [#allocation3], %s387
          %s390 = ssub.s32 16, 16
          %391 = vsyncadd %s386, %s390
          %s392 = smul.addr %s25, 16
          %s393 = scalar_lea.hbm %s0, %s392
          %s395 = sshll.u32 %s388, 4
          %s396 = int_to_ptr.vmem [resolvable:$true] %s395
          %398 = dma.hbm_to_vmem [thread:$0]  %s393, 16, %s396, %s386
        $region60: #{tpu_custom_call.1} parent=55 // pred_fallthru
          _
        // Predicated region
        $region61: #{tpu_custom_call.1} parent=55 // pred_check
          %p399 = pneg %p71
        $region62: #{tpu_custom_call.1} parent=55 // pred_check_branch
          %401 = sbr.rel (%p399) target = $region64
        $region63: #{tpu_custom_call.1} parent=55 // pred_region
          %p402 = scmp.lt.s32.totalorder %s25, 1
          %s403 = scalar_select %p402, %s25, 1
          %s404 = smul.addr %s403, 2
          %s405 = smul.addr %s404, 8
          %s406 = scalar_lea.vmem %s1, %s405
        $region64: #{tpu_custom_call.1} parent=55 // pred_fallthru
          _
      $region56: #{tpu_custom_call.1} parent=5 // pred_fallthru
        _
      %p407 = scmp.le.s32.totalorder 1, %s25
      %p408 = scmp.lt.s32.totalorder %s25, 3
      %p409 = pnand %p407, %p408
      %p410 = pneg %p409
      // Predicated region
      $region65: #{tpu_custom_call.1} parent=5 // pred_check
        _
      $region66: #{tpu_custom_call.1} parent=5 // pred_check_branch
        %412 = sbr.rel (%p409) target = $region68
      $region67: #{tpu_custom_call.1} parent=5 // pred_region
        %s413 = ssub.s32 %s25, 1
        %s414 = sand.u32 %s38, 1
        %s415 = scalar_lea.sflag [#allocation4], %s414
        %s416 = sand.u32 %s38, 1
        %s417 = scalar_lea.vmem [#allocation3], %s416
        // Predicated region
        $region69: #{tpu_custom_call.1} parent=67 // pred_check
          %p418 = pneg %p51
        $region70: #{tpu_custom_call.1} parent=67 // pred_check_branch
          %420 = sbr.rel (%p418) target = $region72
        $region71: #{tpu_custom_call.1} parent=67 // pred_region
          %421 = dma.done %s415, 16
        $region72: #{tpu_custom_call.1} parent=67 // pred_fallthru
          _
        // Predicated region
        $region73: #{tpu_custom_call.1} parent=67 // pred_check
          %p422 = pneg %p182
        $region74: #{tpu_custom_call.1} parent=67 // pred_check_branch
          %424 = sbr.rel (%p422) target = $region76
        $region75: #{tpu_custom_call.1} parent=67 // pred_region
          %425 = dma.done [#allocation7], 512
        $region76: #{tpu_custom_call.1} parent=67 // pred_fallthru
          _
        // Predicated region
        $region77: #{tpu_custom_call.1} parent=67 // pred_check
          %p426 = pneg %p224
        $region78: #{tpu_custom_call.1} parent=67 // pred_check_branch
          %428 = sbr.rel (%p426) target = $region80
        $region79: #{tpu_custom_call.1} parent=67 // pred_region
          %429 = dma.done [#allocation7], 1024
        $region80: #{tpu_custom_call.1} parent=67 // pred_fallthru
          _
        %s430 = sand.u32 %s38, 1
        %s431 = scalar_lea.sflag [#allocation4], %s430
        %s432 = sand.u32 %s38, 1
        %s433 = scalar_lea.vmem [#allocation3], %s432
        %p434 = pneg %p51
        %p435 = pneg %p48
        %p436 = scmp.lt.s32.totalorder %s30, 1
        %s437 = scalar_select %p436, %s30, 1
        %s438 = smul.addr %s437, 2
        %s439 = smul.addr %s438, 8
        %s440 = scalar_lea.vmem %s1, %s439
        %p441 = pneg %p77
        %p442 = pneg %p74
        %p443 = pneg %p98
        %p444 = pneg %p95
        %p445 = pneg %p119
        %p446 = pneg %p116
        %p447 = pneg %p140
        %p448 = pneg %p137
        %p449 = pneg %p161
        %p450 = pneg %p158
        %p451 = pneg %p182
        %p452 = pneg %p179
        %p453 = pneg %p203
        %p454 = pneg %p200
        %p455 = pneg %p224
        %p456 = pneg %p221
        %p457 = pneg %p245
        %p458 = pneg %p242
        %p459 = pneg %p266
        %p460 = pneg %p263
        %p461 = pneg %p287
        %p462 = pneg %p284
        %p463 = pneg %p313
        %p464 = pneg %p310
        %s465 = sand.u32 %s300, 1
        %s466 = scalar_lea.sflag [#allocation5], %s465
        %s467 = sand.u32 %s300, 1
        %s468 = smul.addr %s467, 16
        %s469 = scalar_lea.vmem [#allocation9], %s468
        %p470 = scmp.lt.s32.totalorder %s30, 1
        %s471 = scalar_select %p470, %s30, 1
        %s472 = smul.addr %s471, 2
        %s473 = smul.addr %s472, 8
        %s474 = scalar_lea.vmem %s1, %s473
        %v476 = vld [vmem:[%s474] sm:$0xff]
        %v477 = vld [vmem:[%s474 + $0x8] sm:$0xff]
        %v478 = vld [vmem:[%s417] sm:$0x1]
        %v479 = vxor.u32 %v478, 2147483648
        %v480 = vmul.f32 %v479, 1.442695
        %v481 = vpow.pop %v480
        %v482 = vadd.f32 %v481, 1.0
        %v483 = vrcp.pop %v482
        %v484 = vmul.f32 1.0, %v483
        %v485 = vmul.f32 %v478, %v484
        %v486 = vpack.c.bf16 %v485, %v485
        %v487 = vld [vmem:[%s2] sm:$0xff]
        %v488 = vld [vmem:[%s2 + $0x8] sm:$0xf]
        %v489 = vld [vmem:[%s2 + $0xc] sm:$0xff]
        %v490 = vld [vmem:[%s2 + $0x14] sm:$0xf]
        %v491 = vld [vmem:[%s2 + $0x18] sm:$0xff]
        %v492 = vld [vmem:[%s2 + $0x20] sm:$0xf]
        %v493 = vld [vmem:[%s2 + $0x24] sm:$0xff]
        %v494 = vld [vmem:[%s2 + $0x2c] sm:$0xf]
        %v495 = vld [vmem:[%s2 + $0x30] sm:$0xff]
        %v496 = vld [vmem:[%s2 + $0x38] sm:$0xf]
        %v497 = vld [vmem:[%s2 + $0x3c] sm:$0xff]
        %v498 = vld [vmem:[%s2 + $0x44] sm:$0xf]
        %v499 = vld [vmem:[%s2 + $0x48] sm:$0xff]
        %v500 = vld [vmem:[%s2 + $0x50] sm:$0xf]
        %v501 = vld [vmem:[%s2 + $0x54] sm:$0xff]
        %v502 = vld [vmem:[%s2 + $0x5c] sm:$0xf]
        %v503 = vld [vmem:[%s3] sm:$0x7]
        %v520 = vunpack.c.l.b16 %v487
        %v521 = vunpack.c.h.b16 %v487
        %v522 = vunpack.c.l.b16 %v488
        %v523 = vunpack.c.l.b16 %v489
        %v524 = vunpack.c.h.b16 %v489
        %v525 = vunpack.c.l.b16 %v490
        %v526 = vunpack.c.l.b16 %v491
        %v527 = vunpack.c.h.b16 %v491
        %v528 = vunpack.c.l.b16 %v492
        %v529 = vunpack.c.l.b16 %v493
        %v530 = vunpack.c.h.b16 %v493
        %v531 = vunpack.c.l.b16 %v494
        %v532 = vunpack.c.l.b16 %v495
        %v533 = vunpack.c.h.b16 %v495
        %v534 = vunpack.c.l.b16 %v496
        %v535 = vunpack.c.l.b16 %v497
        %v536 = vunpack.c.h.b16 %v497
        %v537 = vunpack.c.l.b16 %v498
        %v538 = vunpack.c.l.b16 %v499
        %v539 = vunpack.c.h.b16 %v499
        %v540 = vunpack.c.l.b16 %v500
        %v541 = vunpack.c.l.b16 %v501
        %v542 = vunpack.c.h.b16 %v501
        %v543 = vunpack.c.l.b16 %v502
        %v544 = vpack.c.b16 %v523, %v520
        %v545 = vpack.c.b16 %v524, %v521
        %v546 = vpack.c.b16 %v525, %v522
        %v547 = vpack.c.b16 %v529, %v526
        %v548 = vpack.c.b16 %v530, %v527
        %v549 = vpack.c.b16 %v531, %v528
        %v550 = vpack.c.b16 %v535, %v532
        %v551 = vpack.c.b16 %v536, %v533
        %v552 = vpack.c.b16 %v537, %v534
        %v553 = vpack.c.b16 %v541, %v538
        %v554 = vpack.c.b16 %v542, %v539
        %v555 = vpack.c.b16 %v543, %v540
        %v569 = vlaneseq
        %v570 = vshrl.u32 %v569, 7
        %v571 = vsub.s32 0, %v570
        %v572 = vrot.slane %v503, %v571
        %v573 = vlaneseq
        %v574 = vshrl.u32 %v573, 7
        %v575 = vsub.s32 1, %v574
        %v576 = vrot.slane %v503, %v575
        %v577 = vlaneseq
        %v578 = vshrl.u32 %v577, 7
        %v579 = vsub.s32 2, %v578
        %v580 = vrot.slane %v503, %v579
        %vm584 = vcmask 523264
        %v586 = vsel %vm584, %v486, 0
        %588 = vmatprep.subr.bf16.mxu0 0
        %589 = vmatpush1.bf16.msra.mxu0 0
        %590 = vmatprep.subr.bf16.mxu0 0
        %591 = vmatpush1.bf16.msra.mxu0 0
        %592 = vmatprep.subr.bf16.mxu0 0
        %593 = vmatpush1.bf16.msra.mxu0 0
        %594 = vmatprep.subr.bf16.mxu0 0
        %595 = vmatpush1.bf16.msra.mxu0 0
        %596 = vmatprep.subr.bf16.mxu0 %v554
        %597 = vmatpush1.bf16.msra.mxu0 %v553
        %598 = vmatprep.subr.bf16.mxu0 %v551
        %599 = vmatpush1.bf16.msra.mxu0 %v550
        %600 = vmatprep.subr.bf16.mxu0 %v548
        %601 = vmatpush1.bf16.msra.mxu0 %v547
        %602 = vmatprep.subr.bf16.mxu0 %v545
        %603 = vmatpush1.bf16.msra.mxu0 %v544
        %604 = vmatprep.subr.bf16.mxu0 0
        %605 = vmatpush2.bf16.msra.mxu0 0
        %606 = vmatprep.subr.bf16.mxu0 0
        %607 = vmatpush2.bf16.msra.mxu0 0
        %608 = vmatprep.subr.bf16.mxu0 0
        %609 = vmatpush2.bf16.msra.mxu0 0
        %610 = vmatprep.subr.bf16.mxu0 0
        %611 = vmatpush2.bf16.msra.mxu0 0
        %612 = vmatprep.subr.bf16.mxu0 0
        %613 = vmatpush2.bf16.msra.mxu0 0
        %614 = vmatprep.subr.bf16.mxu0 0
        %615 = vmatpush2.bf16.msra.mxu0 0
        %616 = vmatprep.subr.bf16.mxu0 0
        %617 = vmatpush2.bf16.msra.mxu0 0
        %618 = vmatprep.subr.bf16.mxu0 0
        %619 = vmatpush2.bf16.msra.mxu0 0
        %620 = vmatprep.mubr.bf16.mxu0 0
        %621 = vmatmul.mubr.bf16.gmra.mxu0 %v586
        %v622 = vpop.f32.mrf.mxu0
        %v623 = vadd.f32 %v572, %v622
        %v624 = vpop.f32.mrf.mxu0
        %v625 = vadd.f32 %v576, %v624
        %v626 = vpop.f32.mrf.mxu0
        %v627 = vpop.f32.mrf.mxu0
        %628 = vdwg.mxu0
        %629 = vmatprep.subr.bf16.mxu0 0
        %630 = vmatpush1.bf16.msra.mxu0 0
        %631 = vmatprep.subr.bf16.mxu0 0
        %632 = vmatpush1.bf16.msra.mxu0 0
        %633 = vmatprep.subr.bf16.mxu0 0
        %634 = vmatpush1.bf16.msra.mxu0 0
        %635 = vmatprep.subr.bf16.mxu0 0
        %636 = vmatpush1.bf16.msra.mxu0 0
        %637 = vmatprep.subr.bf16.mxu0 0
        %638 = vmatpush1.bf16.msra.mxu0 %v555
        %639 = vmatprep.subr.bf16.mxu0 0
        %640 = vmatpush1.bf16.msra.mxu0 %v552
        %641 = vmatprep.subr.bf16.mxu0 0
        %642 = vmatpush1.bf16.msra.mxu0 %v549
        %643 = vmatprep.subr.bf16.mxu0 0
        %644 = vmatpush1.bf16.msra.mxu0 %v546
        %645 = vmatprep.subr.bf16.mxu0 0
        %646 = vmatpush2.bf16.msra.mxu0 0
        %647 = vmatprep.subr.bf16.mxu0 0
        %648 = vmatpush2.bf16.msra.mxu0 0
        %649 = vmatprep.subr.bf16.mxu0 0
        %650 = vmatpush2.bf16.msra.mxu0 0
        %651 = vmatprep.subr.bf16.mxu0 0
        %652 = vmatpush2.bf16.msra.mxu0 0
        %653 = vmatprep.subr.bf16.mxu0 0
        %654 = vmatpush2.bf16.msra.mxu0 0
        %655 = vmatprep.subr.bf16.mxu0 0
        %656 = vmatpush2.bf16.msra.mxu0 0
        %657 = vmatprep.subr.bf16.mxu0 0
        %658 = vmatpush2.bf16.msra.mxu0 0
        %659 = vmatprep.subr.bf16.mxu0 0
        %660 = vmatpush2.bf16.msra.mxu0 0
        %661 = vmatprep.mubr.bf16.mxu0 0
        %662 = vmatmul.mubr.bf16.gmra.mxu0 %v586
        %v663 = vpop.f32.mrf.mxu0
        %v664 = vadd.f32 %v580, %v663
        %v665 = vpop.f32.mrf.mxu0
        %v666 = vpop.f32.mrf.mxu0
        %v667 = vpop.f32.mrf.mxu0
        %668 = vdwg.mxu0
        %v669 = vsel %vm584, %v476, 0.0
        %670 = vadd.xlane.f32.xlu0 %v669
        %v671 = vpop.xlane.xlu0 %670
        %v672 = vsel %vm584, %v477, 0.0
        %673 = vadd.xlane.f32.xlu0 %v672
        %v674 = vpop.xlane.xlu0 %673
        %v675 = vrcp.pop 64.0
        %v676 = vmul.f32 %v671, %v675
        %v677 = vmul.f32 %v674, %v675
        %v678 = vsub.f32 %v476, %v676
        %v679 = vsub.f32 %v477, %v677
        %v680 = vmul.f32 %v678, %v678
        %v681 = vmul.f32 %v679, %v679
        %v682 = vsel %vm584, %v680, 0.0
        %683 = vadd.xlane.f32.xlu0 %v682
        %v684 = vpop.xlane.xlu0 %683
        %v685 = vsel %vm584, %v681, 0.0
        %686 = vadd.xlane.f32.xlu0 %v685
        %v687 = vpop.xlane.xlu0 %686
        %v688 = vmul.f32 %v684, %v675
        %v689 = vmul.f32 %v687, %v675
        %v690 = vadd.f32 %v688, 1e-06
        %v691 = vadd.f32 %v689, 1e-06
        %v692 = vrsqrt.pop %v690
        %v693 = vrsqrt.pop %v691
        %v694 = vmul.f32 %v678, %v692
        %v695 = vmul.f32 %v679, %v693
        %v696 = vadd.f32 %v623, 1.0
        %v697 = vlaneseq
        %v698 = vshrl.u32 %v697, 7
        %v699 = vsub.s32 0, %v698
        %v700 = vrot.slane %v696, %v699
        %702 = vrot.lane.b32.xlu0 %v700, 64
        %v703 = vpop.permute.xlu0 %702
        %v705 = vmul.f32 %v694, %v703
        %v706 = vmul.f32 %v695, %v703
        %v707 = vlaneseq
        %v708 = vshrl.u32 %v707, 7
        %v709 = vsub.s32 0, %v708
        %v710 = vrot.slane %v623, %v709
        %v711 = vadd.f32 %v705, %v710
        %v712 = vadd.f32 %v706, %v710
        %v713 = vpack.c.bf16 %v712, %v711
        %v714 = vld [vmem:[%s4] sm:$0xff]
        %v715 = vld [vmem:[%s4 + $0x8] sm:$0xff]
        %v716 = vld [vmem:[%s4 + $0x10] sm:$0xff]
        %v717 = vld [vmem:[%s4 + $0x18] sm:$0xff]
        %v718 = vld [vmem:[%s4 + $0x20] sm:$0xff]
        %v719 = vld [vmem:[%s4 + $0x28] sm:$0xff]
        %v720 = vld [vmem:[%s4 + $0x30] sm:$0xff]
        %v721 = vld [vmem:[%s4 + $0x38] sm:$0xff]
        %v722 = vld [vmem:[%s5] sm:$0x3]
        %v724 = vlaneseq
        %v725 = vshrl.u32 %v724, 7
        %v726 = vsub.s32 0, %v725
        %v727 = vrot.slane %v722, %v726
        %v728 = vlaneseq
        %v729 = vshrl.u32 %v728, 7
        %v730 = vsub.s32 1, %v729
        %v731 = vrot.slane %v722, %v730
        %v742 = vunpack.c.l.b16 %v714
        %v743 = vunpack.c.h.b16 %v714
        %v744 = vunpack.c.l.b16 %v715
        %v745 = vunpack.c.h.b16 %v715
        %v746 = vunpack.c.l.b16 %v716
        %v747 = vunpack.c.h.b16 %v716
        %v748 = vunpack.c.l.b16 %v717
        %v749 = vunpack.c.h.b16 %v717
        %v750 = vunpack.c.l.b16 %v718
        %v751 = vunpack.c.h.b16 %v718
        %v752 = vunpack.c.l.b16 %v719
        %v753 = vunpack.c.h.b16 %v719
        %v754 = vunpack.c.l.b16 %v720
        %v755 = vunpack.c.h.b16 %v720
        %v756 = vunpack.c.l.b16 %v721
        %v757 = vunpack.c.h.b16 %v721
        %v758 = vpack.c.b16 %v744, %v742
        %v759 = vpack.c.b16 %v745, %v743
        %v760 = vpack.c.b16 %v748, %v746
        %v761 = vpack.c.b16 %v749, %v747
        %v762 = vpack.c.b16 %v752, %v750
        %v763 = vpack.c.b16 %v753, %v751
        %v764 = vpack.c.b16 %v756, %v754
        %v765 = vpack.c.b16 %v757, %v755
        %v775 = vsel %vm584, %v713, 0
        %777 = vmatprep.subr.bf16.mxu0 0
        %778 = vmatpush1.bf16.msra.mxu0 0
        %779 = vmatprep.subr.bf16.mxu0 0
        %780 = vmatpush1.bf16.msra.mxu0 0
        %781 = vmatprep.subr.bf16.mxu0 0
        %782 = vmatpush1.bf16.msra.mxu0 0
        %783 = vmatprep.subr.bf16.mxu0 0
        %784 = vmatpush1.bf16.msra.mxu0 0
        %785 = vmatprep.subr.bf16.mxu0 %v765
        %786 = vmatpush1.bf16.msra.mxu0 %v764
        %787 = vmatprep.subr.bf16.mxu0 %v763
        %788 = vmatpush1.bf16.msra.mxu0 %v762
        %789 = vmatprep.subr.bf16.mxu0 %v761
        %790 = vmatpush1.bf16.msra.mxu0 %v760
        %791 = vmatprep.subr.bf16.mxu0 %v759
        %792 = vmatpush1.bf16.msra.mxu0 %v758
        %793 = vmatprep.subr.bf16.mxu0 0
        %794 = vmatpush2.bf16.msra.mxu0 0
        %795 = vmatprep.subr.bf16.mxu0 0
        %796 = vmatpush2.bf16.msra.mxu0 0
        %797 = vmatprep.subr.bf16.mxu0 0
        %798 = vmatpush2.bf16.msra.mxu0 0
        %799 = vmatprep.subr.bf16.mxu0 0
        %800 = vmatpush2.bf16.msra.mxu0 0
        %801 = vmatprep.subr.bf16.mxu0 0
        %802 = vmatpush2.bf16.msra.mxu0 0
        %803 = vmatprep.subr.bf16.mxu0 0
        %804 = vmatpush2.bf16.msra.mxu0 0
        %805 = vmatprep.subr.bf16.mxu0 0
        %806 = vmatpush2.bf16.msra.mxu0 0
        %807 = vmatprep.subr.bf16.mxu0 0
        %808 = vmatpush2.bf16.msra.mxu0 0
        %809 = vmatprep.mubr.bf16.mxu0 0
        %810 = vmatmul.mubr.bf16.gmra.mxu0 %v775
        %v811 = vpop.f32.mrf.mxu0
        %v812 = vadd.f32 %v727, %v811
        %v813 = vpop.f32.mrf.mxu0
        %v814 = vadd.f32 %v731, %v813
        %v815 = vpop.f32.mrf.mxu0
        %v816 = vadd.f32 %v727, %v815
        %v817 = vpop.f32.mrf.mxu0
        %v818 = vadd.f32 %v731, %v817
        %819 = vdwg.mxu0
        %v820 = vmul.f32 %v812, 0.25
        %v821 = vmul.f32 %v816, 0.25
        %v822 = vpack.c.bf16 %v821, %v820
        %v823 = vpack.c.bf16 %v816, %v812
        %v824 = vpack.c.bf16 %v818, %v814
        %826 = vrot.lane.b32.xlu0 %v823, 64
        %v827 = vpop.permute.xlu0 %826
        %vm828 = vcmask 130048
        %v830 = vsel %vm828, %v822, 0
        %v833 = vsel %vm828, %v827, 0
        %835 = vmatprep.subr.bf16.mxu0 0
        %836 = vmatpush1.bf16.xpose.msra.mxu0 0
        %837 = vmatprep.subr.bf16.mxu0 0
        %838 = vmatpush1.bf16.xpose.msra.mxu0 0
        %839 = vmatprep.subr.bf16.mxu0 0
        %840 = vmatpush1.bf16.xpose.msra.mxu0 0
        %841 = vmatprep.subr.bf16.mxu0 0
        %842 = vmatpush1.bf16.xpose.msra.mxu0 0
        %843 = vmatprep.subr.bf16.mxu0 0
        %844 = vmatpush1.bf16.xpose.msra.mxu0 0
        %845 = vmatprep.subr.bf16.mxu0 0
        %846 = vmatpush1.bf16.xpose.msra.mxu0 0
        %847 = vmatprep.subr.bf16.mxu0 0
        %848 = vmatpush1.bf16.xpose.msra.mxu0 0
        %849 = vmatprep.subr.bf16.mxu0 0
        %850 = vmatpush1.bf16.xpose.msra.mxu0 %v833
        %851 = vmatprep.subr.bf16.mxu0 0
        %852 = vmatpush2.bf16.xpose.msra.mxu0 0
        %853 = vmatprep.subr.bf16.mxu0 0
        %854 = vmatpush2.bf16.xpose.msra.mxu0 0
        %855 = vmatprep.subr.bf16.mxu0 0
        %856 = vmatpush2.bf16.xpose.msra.mxu0 0
        %857 = vmatprep.subr.bf16.mxu0 0
        %858 = vmatpush2.bf16.xpose.msra.mxu0 0
        %859 = vmatprep.subr.bf16.mxu0 0
        %860 = vmatpush2.bf16.xpose.msra.mxu0 0
        %861 = vmatprep.subr.bf16.mxu0 0
        %862 = vmatpush2.bf16.xpose.msra.mxu0 0
        %863 = vmatprep.subr.bf16.mxu0 0
        %864 = vmatpush2.bf16.xpose.msra.mxu0 0
        %865 = vmatprep.subr.bf16.mxu0 0
        %866 = vmatpush2.bf16.xpose.msra.mxu0 0
        %867 = vmatprep.mubr.bf16.mxu0 0
        %868 = vmatmul.mubr.bf16.gmra.mxu0 %v830
        %v869 = vpop.f32.mrf.mxu0
        %v870 = vadd.f32 0.0, %v869
        %v871 = vpop.f32.mrf.mxu0
        %v872 = vpop.f32.mrf.mxu0
        %v873 = vadd.f32 0.0, %v872
        %v874 = vpop.f32.mrf.mxu0
        %875 = vdwg.mxu0
        %v876 = vsel %vm828, %v870, -inf
        %877 = vmax.xlane.f32.xlu0 %v876
        %v878 = vpop.xlane.xlu0 %877
        %v879 = vsel %vm828, %v873, -inf
        %880 = vmax.xlane.f32.xlu0 %v879
        %v881 = vpop.xlane.xlu0 %880
        %v882 = vsub.f32 %v870, %v878
        %v883 = vsub.f32 %v873, %v881
        %v884 = vmul.f32 %v882, 1.442695
        %v885 = vpow.pop %v884
        %v886 = vmul.f32 %v883, 1.442695
        %v887 = vpow.pop %v886
        %v888 = vsel %vm828, %v885, 0.0
        %889 = vadd.xlane.f32.xlu0 %v888
        %v890 = vpop.xlane.xlu0 %889
        %v891 = vsel %vm828, %v887, 0.0
        %892 = vadd.xlane.f32.xlu0 %v891
        %v893 = vpop.xlane.xlu0 %892
        %v894 = vrcp.pop %v890
        %v895 = vrcp.pop %v893
        %v896 = vmul.f32 %v885, %v894
        %v897 = vmul.f32 %v887, %v895
        %v898 = vpack.c.bf16 %v897, %v896
        %v900 = vsel %vm828, %v898, 0
        %902 = vmatprep.subr.bf16.mxu0 0
        %903 = vmatpush1.bf16.msra.mxu0 0
        %904 = vmatprep.subr.bf16.mxu0 0
        %905 = vmatpush1.bf16.msra.mxu0 0
        %906 = vmatprep.subr.bf16.mxu0 0
        %907 = vmatpush1.bf16.msra.mxu0 0
        %908 = vmatprep.subr.bf16.mxu0 0
        %909 = vmatpush1.bf16.msra.mxu0 0
        %910 = vmatprep.subr.bf16.mxu0 0
        %911 = vmatpush1.bf16.msra.mxu0 0
        %912 = vmatprep.subr.bf16.mxu0 0
        %913 = vmatpush1.bf16.msra.mxu0 0
        %914 = vmatprep.subr.bf16.mxu0 0
        %915 = vmatpush1.bf16.msra.mxu0 0
        %916 = vmatprep.subr.bf16.mxu0 0
        %917 = vmatpush1.bf16.msra.mxu0 %v824
        %918 = vmatprep.subr.bf16.mxu0 0
        %919 = vmatpush2.bf16.msra.mxu0 0
        %920 = vmatprep.subr.bf16.mxu0 0
        %921 = vmatpush2.bf16.msra.mxu0 0
        %922 = vmatprep.subr.bf16.mxu0 0
        %923 = vmatpush2.bf16.msra.mxu0 0
        %924 = vmatprep.subr.bf16.mxu0 0
        %925 = vmatpush2.bf16.msra.mxu0 0
        %926 = vmatprep.subr.bf16.mxu0 0
        %927 = vmatpush2.bf16.msra.mxu0 0
        %928 = vmatprep.subr.bf16.mxu0 0
        %929 = vmatpush2.bf16.msra.mxu0 0
        %930 = vmatprep.subr.bf16.mxu0 0
        %931 = vmatpush2.bf16.msra.mxu0 0
        %932 = vmatprep.subr.bf16.mxu0 0
        %933 = vmatpush2.bf16.msra.mxu0 0
        %934 = vmatprep.mubr.bf16.mxu0 0
        %935 = vmatmul.mubr.bf16.gmra.mxu0 %v900
        %v936 = vpop.f32.mrf.mxu0
        %v937 = vadd.f32 0.0, %v936
        %v938 = vpop.f32.mrf.mxu0
        %v939 = vpop.f32.mrf.mxu0
        %v940 = vadd.f32 0.0, %v939
        %v941 = vpop.f32.mrf.mxu0
        %942 = vdwg.mxu0
        %943 = vst.msk [vmem:[#allocation2] sm:$0xff] %vm828, %v937
        %944 = vst.msk [vmem:[#allocation2 + $0x8] sm:$0xff] %vm828, %v940
        %946 = vrot.lane.b32.xlu0 %v822, 112
        %v947 = vpop.permute.xlu0 %946
        %948 = vrot.lane.b32.xlu0 %v823, 48
        %v949 = vpop.permute.xlu0 %948
        %v951 = vsel %vm828, %v947, 0
        %v954 = vsel %vm828, %v949, 0
        %956 = vmatprep.subr.bf16.mxu0 0
        %957 = vmatpush1.bf16.xpose.msra.mxu0 0
        %958 = vmatprep.subr.bf16.mxu0 0
        %959 = vmatpush1.bf16.xpose.msra.mxu0 0
        %960 = vmatprep.subr.bf16.mxu0 0
        %961 = vmatpush1.bf16.xpose.msra.mxu0 0
        %962 = vmatprep.subr.bf16.mxu0 0
        %963 = vmatpush1.bf16.xpose.msra.mxu0 0
        %964 = vmatprep.subr.bf16.mxu0 0
        %965 = vmatpush1.bf16.xpose.msra.mxu0 0
        %966 = vmatprep.subr.bf16.mxu0 0
        %967 = vmatpush1.bf16.xpose.msra.mxu0 0
        %968 = vmatprep.subr.bf16.mxu0 0
        %969 = vmatpush1.bf16.xpose.msra.mxu0 0
        %970 = vmatprep.subr.bf16.mxu0 0
        %971 = vmatpush1.bf16.xpose.msra.mxu0 %v954
        %972 = vmatprep.subr.bf16.mxu0 0
        %973 = vmatpush2.bf16.xpose.msra.mxu0 0
        %974 = vmatprep.subr.bf16.mxu0 0
        %975 = vmatpush2.bf16.xpose.msra.mxu0 0
        %976 = vmatprep.subr.bf16.mxu0 0
        %977 = vmatpush2.bf16.xpose.msra.mxu0 0
        %978 = vmatprep.subr.bf16.mxu0 0
        %979 = vmatpush2.bf16.xpose.msra.mxu0 0
        %980 = vmatprep.subr.bf16.mxu0 0
        %981 = vmatpush2.bf16.xpose.msra.mxu0 0
        %982 = vmatprep.subr.bf16.mxu0 0
        %983 = vmatpush2.bf16.xpose.msra.mxu0 0
        %984 = vmatprep.subr.bf16.mxu0 0
        %985 = vmatpush2.bf16.xpose.msra.mxu0 0
        %986 = vmatprep.subr.bf16.mxu0 0
        %987 = vmatpush2.bf16.xpose.msra.mxu0 0
        %988 = vmatprep.mubr.bf16.mxu0 0
        %989 = vmatmul.mubr.bf16.gmra.mxu0 %v951
        %v990 = vpop.f32.mrf.mxu0
        %v991 = vadd.f32 0.0, %v990
        %v992 = vpop.f32.mrf.mxu0
        %v993 = vpop.f32.mrf.mxu0
        %v994 = vadd.f32 0.0, %v993
        %v995 = vpop.f32.mrf.mxu0
        %996 = vdwg.mxu0
        %v997 = vsel %vm828, %v991, -inf
        %998 = vmax.xlane.f32.xlu0 %v997
        %v999 = vpop.xlane.xlu0 %998
        %v1000 = vsel %vm828, %v994, -inf
        %1001 = vmax.xlane.f32.xlu0 %v1000
        %v1002 = vpop.xlane.xlu0 %1001
        %v1003 = vsub.f32 %v991, %v999
        %v1004 = vsub.f32 %v994, %v1002
        %v1005 = vmul.f32 %v1003, 1.442695
        %v1006 = vpow.pop %v1005
        %v1007 = vmul.f32 %v1004, 1.442695
        %v1008 = vpow.pop %v1007
        %v1009 = vsel %vm828, %v1006, 0.0
        %1010 = vadd.xlane.f32.xlu0 %v1009
        %v1011 = vpop.xlane.xlu0 %1010
        %v1012 = vsel %vm828, %v1008, 0.0
        %1013 = vadd.xlane.f32.xlu0 %v1012
        %v1014 = vpop.xlane.xlu0 %1013
        %v1015 = vrcp.pop %v1011
        %v1016 = vrcp.pop %v1014
        %v1017 = vmul.f32 %v1006, %v1015
        %v1018 = vmul.f32 %v1008, %v1016
        %v1019 = vpack.c.bf16 %v1018, %v1017
        %1021 = vrot.lane.b32.xlu0 %v824, 112
        %v1022 = vpop.permute.xlu0 %1021
        %v1025 = vsel %vm828, %v1019, 0
        %1027 = vmatprep.subr.bf16.mxu0 0
        %1028 = vmatpush1.bf16.msra.mxu0 0
        %1029 = vmatprep.subr.bf16.mxu0 0
        %1030 = vmatpush1.bf16.msra.mxu0 0
        %1031 = vmatprep.subr.bf16.mxu0 0
        %1032 = vmatpush1.bf16.msra.mxu0 0
        %1033 = vmatprep.subr.bf16.mxu0 0
        %1034 = vmatpush1.bf16.msra.mxu0 0
        %1035 = vmatprep.subr.bf16.mxu0 0
        %1036 = vmatpush1.bf16.msra.mxu0 0
        %1037 = vmatprep.subr.bf16.mxu0 0
        %1038 = vmatpush1.bf16.msra.mxu0 0
        %1039 = vmatprep.subr.bf16.mxu0 0
        %1040 = vmatpush1.bf16.msra.mxu0 0
        %1041 = vmatprep.subr.bf16.mxu0 0
        %1042 = vmatpush1.bf16.msra.mxu0 %v1022
        %1043 = vmatprep.subr.bf16.mxu0 0
        %1044 = vmatpush2.bf16.msra.mxu0 0
        %1045 = vmatprep.subr.bf16.mxu0 0
        %1046 = vmatpush2.bf16.msra.mxu0 0
        %1047 = vmatprep.subr.bf16.mxu0 0
        %1048 = vmatpush2.bf16.msra.mxu0 0
        %1049 = vmatprep.subr.bf16.mxu0 0
        %1050 = vmatpush2.bf16.msra.mxu0 0
        %1051 = vmatprep.subr.bf16.mxu0 0
        %1052 = vmatpush2.bf16.msra.mxu0 0
        %1053 = vmatprep.subr.bf16.mxu0 0
        %1054 = vmatpush2.bf16.msra.mxu0 0
        %1055 = vmatprep.subr.bf16.mxu0 0
        %1056 = vmatpush2.bf16.msra.mxu0 0
        %1057 = vmatprep.subr.bf16.mxu0 0
        %1058 = vmatpush2.bf16.msra.mxu0 0
        %1059 = vmatprep.mubr.bf16.mxu0 0
        %1060 = vmatmul.mubr.bf16.gmra.mxu0 %v1025
        %v1061 = vpop.f32.mrf.mxu0
        %v1062 = vadd.f32 0.0, %v1061
        %v1063 = vpop.f32.mrf.mxu0
        %v1064 = vpop.f32.mrf.mxu0
        %v1065 = vadd.f32 0.0, %v1064
        %v1066 = vpop.f32.mrf.mxu0
        %1067 = vdwg.mxu0
        %1070 = vrot.lane.b32.xlu0 %v1062, 16
        %v1071 = vpop.permute.xlu0 %1070
        %1072 = vrot.lane.b32.xlu0 %v1065, 16
        %v1073 = vpop.permute.xlu0 %1072
        %vm1076 = vcmask 261248
        %1077 = vst.msk [vmem:[#allocation2] sm:$0xff] %vm1076, %v1071
        %1078 = vst.msk [vmem:[#allocation2 + $0x8] sm:$0xff] %vm1076, %v1073
        %1079 = vrot.lane.b32.xlu0 %v822, 96
        %v1080 = vpop.permute.xlu0 %1079
        %1081 = vrot.lane.b32.xlu0 %v823, 32
        %v1082 = vpop.permute.xlu0 %1081
        %v1084 = vsel %vm828, %v1080, 0
        %v1087 = vsel %vm828, %v1082, 0
        %1089 = vmatprep.subr.bf16.mxu0 0
        %1090 = vmatpush1.bf16.xpose.msra.mxu0 0
        %1091 = vmatprep.subr.bf16.mxu0 0
        %1092 = vmatpush1.bf16.xpose.msra.mxu0 0
        %1093 = vmatprep.subr.bf16.mxu0 0
        %1094 = vmatpush1.bf16.xpose.msra.mxu0 0
        %1095 = vmatprep.subr.bf16.mxu0 0
        %1096 = vmatpush1.bf16.xpose.msra.mxu0 0
        %1097 = vmatprep.subr.bf16.mxu0 0
        %1098 = vmatpush1.bf16.xpose.msra.mxu0 0
        %1099 = vmatprep.subr.bf16.mxu0 0
        %1100 = vmatpush1.bf16.xpose.msra.mxu0 0
        %1101 = vmatprep.subr.bf16.mxu0 0
        %1102 = vmatpush1.bf16.xpose.msra.mxu0 0
        %1103 = vmatprep.subr.bf16.mxu0 0
        %1104 = vmatpush1.bf16.xpose.msra.mxu0 %v1087
        %1105 = vmatprep.subr.bf16.mxu0 0
        %1106 = vmatpush2.bf16.xpose.msra.mxu0 0
        %1107 = vmatprep.subr.bf16.mxu0 0
        %1108 = vmatpush2.bf16.xpose.msra.mxu0 0
        %1109 = vmatprep.subr.bf16.mxu0 0
        %1110 = vmatpush2.bf16.xpose.msra.mxu0 0
        %1111 = vmatprep.subr.bf16.mxu0 0
        %1112 = vmatpush2.bf16.xpose.msra.mxu0 0
        %1113 = vmatprep.subr.bf16.mxu0 0
        %1114 = vmatpush2.bf16.xpose.msra.mxu0 0
        %1115 = vmatprep.subr.bf16.mxu0 0
        %1116 = vmatpush2.bf16.xpose.msra.mxu0 0
        %1117 = vmatprep.subr.bf16.mxu0 0
        %1118 = vmatpush2.bf16.xpose.msra.mxu0 0
        %1119 = vmatprep.subr.bf16.mxu0 0
        %1120 = vmatpush2.bf16.xpose.msra.mxu0 0
        %1121 = vmatprep.mubr.bf16.mxu0 0
        %1122 = vmatmul.mubr.bf16.gmra.mxu0 %v1084
        %v1123 = vpop.f32.mrf.mxu0
        %v1124 = vadd.f32 0.0, %v1123
        %v1125 = vpop.f32.mrf.mxu0
        %v1126 = vpop.f32.mrf.mxu0
        %v1127 = vadd.f32 0.0, %v1126
        %v1128 = vpop.f32.mrf.mxu0
        %1129 = vdwg.mxu0
        %v1130 = vsel %vm828, %v1124, -inf
        %1131 = vmax.xlane.f32.xlu0 %v1130
        %v1132 = vpop.xlane.xlu0 %1131
        %v1133 = vsel %vm828, %v1127, -inf
        %1134 = vmax.xlane.f32.xlu0 %v1133
        %v1135 = vpop.xlane.xlu0 %1134
        %v1136 = vsub.f32 %v1124, %v1132
        %v1137 = vsub.f32 %v1127, %v1135
        %v1138 = vmul.f32 %v1136, 1.442695
        %v1139 = vpow.pop %v1138
        %v1140 = vmul.f32 %v1137, 1.442695
        %v1141 = vpow.pop %v1140
        %v1142 = vsel %vm828, %v1139, 0.0
        %1143 = vadd.xlane.f32.xlu0 %v1142
        %v1144 = vpop.xlane.xlu0 %1143
        %v1145 = vsel %vm828, %v1141, 0.0
        %1146 = vadd.xlane.f32.xlu0 %v1145
        %v1147 = vpop.xlane.xlu0 %1146
        %v1148 = vrcp.pop %v1144
        %v1149 = vrcp.pop %v1147
        %v1150 = vmul.f32 %v1139, %v1148
        %v1151 = vmul.f32 %v1141, %v1149
        %v1152 = vpack.c.bf16 %v1151, %v1150
        %1153 = vrot.lane.b32.xlu0 %v824, 96
        %v1154 = vpop.permute.xlu0 %1153
        %v1157 = vsel %vm828, %v1152, 0
        %1159 = vmatprep.subr.bf16.mxu0 0
        %1160 = vmatpush1.bf16.msra.mxu0 0
        %1161 = vmatprep.subr.bf16.mxu0 0
        %1162 = vmatpush1.bf16.msra.mxu0 0
        %1163 = vmatprep.subr.bf16.mxu0 0
        %1164 = vmatpush1.bf16.msra.mxu0 0
        %1165 = vmatprep.subr.bf16.mxu0 0
        %1166 = vmatpush1.bf16.msra.mxu0 0
        %1167 = vmatprep.subr.bf16.mxu0 0
        %1168 = vmatpush1.bf16.msra.mxu0 0
        %1169 = vmatprep.subr.bf16.mxu0 0
        %1170 = vmatpush1.bf16.msra.mxu0 0
        %1171 = vmatprep.subr.bf16.mxu0 0
        %1172 = vmatpush1.bf16.msra.mxu0 0
        %1173 = vmatprep.subr.bf16.mxu0 0
        %1174 = vmatpush1.bf16.msra.mxu0 %v1154
        %1175 = vmatprep.subr.bf16.mxu0 0
        %1176 = vmatpush2.bf16.msra.mxu0 0
        %1177 = vmatprep.subr.bf16.mxu0 0
        %1178 = vmatpush2.bf16.msra.mxu0 0
        %1179 = vmatprep.subr.bf16.mxu0 0
        %1180 = vmatpush2.bf16.msra.mxu0 0
        %1181 = vmatprep.subr.bf16.mxu0 0
        %1182 = vmatpush2.bf16.msra.mxu0 0
        %1183 = vmatprep.subr.bf16.mxu0 0
        %1184 = vmatpush2.bf16.msra.mxu0 0
        %1185 = vmatprep.subr.bf16.mxu0 0
        %1186 = vmatpush2.bf16.msra.mxu0 0
        %1187 = vmatprep.subr.bf16.mxu0 0
        %1188 = vmatpush2.bf16.msra.mxu0 0
        %1189 = vmatprep.subr.bf16.mxu0 0
        %1190 = vmatpush2.bf16.msra.mxu0 0
        %1191 = vmatprep.mubr.bf16.mxu0 0
        %1192 = vmatmul.mubr.bf16.gmra.mxu0 %v1157
        %v1193 = vpop.f32.mrf.mxu0
        %v1194 = vadd.f32 0.0, %v1193
        %v1195 = vpop.f32.mrf.mxu0
        %v1196 = vpop.f32.mrf.mxu0
        %v1197 = vadd.f32 0.0, %v1196
        %v1198 = vpop.f32.mrf.mxu0
        %1199 = vdwg.mxu0
        %1202 = vrot.lane.b32.xlu0 %v1194, 32
        %v1203 = vpop.permute.xlu0 %1202
        %1204 = vrot.lane.b32.xlu0 %v1197, 32
        %v1205 = vpop.permute.xlu0 %1204
        %vm1208 = vcmask 392448
        %1209 = vst.msk [vmem:[#allocation2] sm:$0xff] %vm1208, %v1203
        %1210 = vst.msk [vmem:[#allocation2 + $0x8] sm:$0xff] %vm1208, %v1205
        %1211 = vrot.lane.b32.xlu0 %v822, 80
        %v1212 = vpop.permute.xlu0 %1211
        %1213 = vrot.lane.b32.xlu0 %v823, 16
        %v1214 = vpop.permute.xlu0 %1213
        %v1216 = vsel %vm828, %v1212, 0
        %v1219 = vsel %vm828, %v1214, 0
        %1221 = vmatprep.subr.bf16.mxu0 0
        %1222 = vmatpush1.bf16.xpose.msra.mxu0 0
        %1223 = vmatprep.subr.bf16.mxu0 0
        %1224 = vmatpush1.bf16.xpose.msra.mxu0 0
        %1225 = vmatprep.subr.bf16.mxu0 0
        %1226 = vmatpush1.bf16.xpose.msra.mxu0 0
        %1227 = vmatprep.subr.bf16.mxu0 0
        %1228 = vmatpush1.bf16.xpose.msra.mxu0 0
        %1229 = vmatprep.subr.bf16.mxu0 0
        %1230 = vmatpush1.bf16.xpose.msra.mxu0 0
        %1231 = vmatprep.subr.bf16.mxu0 0
        %1232 = vmatpush1.bf16.xpose.msra.mxu0 0
        %1233 = vmatprep.subr.bf16.mxu0 0
        %1234 = vmatpush1.bf16.xpose.msra.mxu0 0
        %1235 = vmatprep.subr.bf16.mxu0 0
        %1236 = vmatpush1.bf16.xpose.msra.mxu0 %v1219
        %1237 = vmatprep.subr.bf16.mxu0 0
        %1238 = vmatpush2.bf16.xpose.msra.mxu0 0
        %1239 = vmatprep.subr.bf16.mxu0 0
        %1240 = vmatpush2.bf16.xpose.msra.mxu0 0
        %1241 = vmatprep.subr.bf16.mxu0 0
        %1242 = vmatpush2.bf16.xpose.msra.mxu0 0
        %1243 = vmatprep.subr.bf16.mxu0 0
        %1244 = vmatpush2.bf16.xpose.msra.mxu0 0
        %1245 = vmatprep.subr.bf16.mxu0 0
        %1246 = vmatpush2.bf16.xpose.msra.mxu0 0
        %1247 = vmatprep.subr.bf16.mxu0 0
        %1248 = vmatpush2.bf16.xpose.msra.mxu0 0
        %1249 = vmatprep.subr.bf16.mxu0 0
        %1250 = vmatpush2.bf16.xpose.msra.mxu0 0
        %1251 = vmatprep.subr.bf16.mxu0 0
        %1252 = vmatpush2.bf16.xpose.msra.mxu0 0
        %1253 = vmatprep.mubr.bf16.mxu0 0
        %1254 = vmatmul.mubr.bf16.gmra.mxu0 %v1216
        %v1255 = vpop.f32.mrf.mxu0
        %v1256 = vadd.f32 0.0, %v1255
        %v1257 = vpop.f32.mrf.mxu0
        %v1258 = vpop.f32.mrf.mxu0
        %v1259 = vadd.f32 0.0, %v1258
        %v1260 = vpop.f32.mrf.mxu0
        %1261 = vdwg.mxu0
        %v1262 = vsel %vm828, %v1256, -inf
        %1263 = vmax.xlane.f32.xlu0 %v1262
        %v1264 = vpop.xlane.xlu0 %1263
        %v1265 = vsel %vm828, %v1259, -inf
        %1266 = vmax.xlane.f32.xlu0 %v1265
        %v1267 = vpop.xlane.xlu0 %1266
        %v1268 = vsub.f32 %v1256, %v1264
        %v1269 = vsub.f32 %v1259, %v1267
        %v1270 = vmul.f32 %v1268, 1.442695
        %v1271 = vpow.pop %v1270
        %v1272 = vmul.f32 %v1269, 1.442695
        %v1273 = vpow.pop %v1272
        %v1274 = vsel %vm828, %v1271, 0.0
        %1275 = vadd.xlane.f32.xlu0 %v1274
        %v1276 = vpop.xlane.xlu0 %1275
        %v1277 = vsel %vm828, %v1273, 0.0
        %1278 = vadd.xlane.f32.xlu0 %v1277
        %v1279 = vpop.xlane.xlu0 %1278
        %v1280 = vrcp.pop %v1276
        %v1281 = vrcp.pop %v1279
        %v1282 = vmul.f32 %v1271, %v1280
        %v1283 = vmul.f32 %v1273, %v1281
        %v1284 = vpack.c.bf16 %v1283, %v1282
        %1285 = vrot.lane.b32.xlu0 %v824, 80
        %v1286 = vpop.permute.xlu0 %1285
        %v1289 = vsel %vm828, %v1284, 0
        %1291 = vmatprep.subr.bf16.mxu0 0
        %1292 = vmatpush1.bf16.msra.mxu0 0
        %1293 = vmatprep.subr.bf16.mxu0 0
        %1294 = vmatpush1.bf16.msra.mxu0 0
        %1295 = vmatprep.subr.bf16.mxu0 0
        %1296 = vmatpush1.bf16.msra.mxu0 0
        %1297 = vmatprep.subr.bf16.mxu0 0
        %1298 = vmatpush1.bf16.msra.mxu0 0
        %1299 = vmatprep.subr.bf16.mxu0 0
        %1300 = vmatpush1.bf16.msra.mxu0 0
        %1301 = vmatprep.subr.bf16.mxu0 0
        %1302 = vmatpush1.bf16.msra.mxu0 0
        %1303 = vmatprep.subr.bf16.mxu0 0
        %1304 = vmatpush1.bf16.msra.mxu0 0
        %1305 = vmatprep.subr.bf16.mxu0 0
        %1306 = vmatpush1.bf16.msra.mxu0 %v1286
        %1307 = vmatprep.subr.bf16.mxu0 0
        %1308 = vmatpush2.bf16.msra.mxu0 0
        %1309 = vmatprep.subr.bf16.mxu0 0
        %1310 = vmatpush2.bf16.msra.mxu0 0
        %1311 = vmatprep.subr.bf16.mxu0 0
        %1312 = vmatpush2.bf16.msra.mxu0 0
        %1313 = vmatprep.subr.bf16.mxu0 0
        %1314 = vmatpush2.bf16.msra.mxu0 0
        %1315 = vmatprep.subr.bf16.mxu0 0
        %1316 = vmatpush2.bf16.msra.mxu0 0
        %1317 = vmatprep.subr.bf16.mxu0 0
        %1318 = vmatpush2.bf16.msra.mxu0 0
        %1319 = vmatprep.subr.bf16.mxu0 0
        %1320 = vmatpush2.bf16.msra.mxu0 0
        %1321 = vmatprep.subr.bf16.mxu0 0
        %1322 = vmatpush2.bf16.msra.mxu0 0
        %1323 = vmatprep.mubr.bf16.mxu0 0
        %1324 = vmatmul.mubr.bf16.gmra.mxu0 %v1289
        %v1325 = vpop.f32.mrf.mxu0
        %v1326 = vadd.f32 0.0, %v1325
        %v1327 = vpop.f32.mrf.mxu0
        %v1328 = vpop.f32.mrf.mxu0
        %v1329 = vadd.f32 0.0, %v1328
        %v1330 = vpop.f32.mrf.mxu0
        %1331 = vdwg.mxu0
        %1334 = vrot.lane.b32.xlu0 %v1326, 48
        %v1335 = vpop.permute.xlu0 %1334
        %1336 = vrot.lane.b32.xlu0 %v1329, 48
        %v1337 = vpop.permute.xlu0 %1336
        %vm1340 = vcmask 523648
        %1341 = vst.msk [vmem:[#allocation2] sm:$0xff] %vm1340, %v1335
        %1342 = vst.msk [vmem:[#allocation2 + $0x8] sm:$0xff] %vm1340, %v1337
        %v1343 = vld [vmem:[#allocation2] sm:$0xff]
        %v1344 = vld [vmem:[#allocation2 + $0x8] sm:$0xff]
        %v1345 = vpack.c.bf16 %v1344, %v1343
        %v1346 = vld [vmem:[#allocation6] sm:$0xf]
        %v1347 = vld [vmem:[#allocation6 + $0x4] sm:$0xf]
        %v1348 = vld [vmem:[#allocation6 + $0x8] sm:$0xf]
        %v1349 = vld [vmem:[#allocation6 + $0xc] sm:$0xf]
        %v1350 = vld [vmem:[#allocation6 + $0x10] sm:$0xf]
        %v1351 = vld [vmem:[#allocation6 + $0x14] sm:$0xf]
        %v1352 = vld [vmem:[#allocation6 + $0x18] sm:$0xf]
        %v1353 = vld [vmem:[#allocation6 + $0x1c] sm:$0xf]
        %v1354 = vld [vmem:[%s7] sm:$0x1]
        %v1356 = vlaneseq
        %v1357 = vshrl.u32 %v1356, 7
        %v1358 = vsub.s32 0, %v1357
        %v1359 = vrot.slane %v1354, %v1358
        %v1369 = vunpack.c.l.b16 %v1346
        %v1370 = vunpack.c.l.b16 %v1347
        %v1371 = vunpack.c.l.b16 %v1348
        %v1372 = vunpack.c.l.b16 %v1349
        %v1373 = vunpack.c.l.b16 %v1350
        %v1374 = vunpack.c.l.b16 %v1351
        %v1375 = vunpack.c.l.b16 %v1352
        %v1376 = vunpack.c.l.b16 %v1353
        %v1377 = vpack.c.b16 %v1370, %v1369
        %v1378 = vpack.c.b16 %v1372, %v1371
        %v1379 = vpack.c.b16 %v1374, %v1373
        %v1380 = vpack.c.b16 %v1376, %v1375
        %v1386 = vsel %vm584, %v1345, 0
        %1388 = vmatprep.subr.bf16.mxu0 0
        %1389 = vmatpush1.bf16.msra.mxu0 0
        %1390 = vmatprep.subr.bf16.mxu0 0
        %1391 = vmatpush1.bf16.msra.mxu0 0
        %1392 = vmatprep.subr.bf16.mxu0 0
        %1393 = vmatpush1.bf16.msra.mxu0 0
        %1394 = vmatprep.subr.bf16.mxu0 0
        %1395 = vmatpush1.bf16.msra.mxu0 0
        %1396 = vmatprep.subr.bf16.mxu0 0
        %1397 = vmatpush1.bf16.msra.mxu0 %v1380
        %1398 = vmatprep.subr.bf16.mxu0 0
        %1399 = vmatpush1.bf16.msra.mxu0 %v1379
        %1400 = vmatprep.subr.bf16.mxu0 0
        %1401 = vmatpush1.bf16.msra.mxu0 %v1378
        %1402 = vmatprep.subr.bf16.mxu0 0
        %1403 = vmatpush1.bf16.msra.mxu0 %v1377
        %1404 = vmatprep.subr.bf16.mxu0 0
        %1405 = vmatpush2.bf16.msra.mxu0 0
        %1406 = vmatprep.subr.bf16.mxu0 0
        %1407 = vmatpush2.bf16.msra.mxu0 0
        %1408 = vmatprep.subr.bf16.mxu0 0
        %1409 = vmatpush2.bf16.msra.mxu0 0
        %1410 = vmatprep.subr.bf16.mxu0 0
        %1411 = vmatpush2.bf16.msra.mxu0 0
        %1412 = vmatprep.subr.bf16.mxu0 0
        %1413 = vmatpush2.bf16.msra.mxu0 0
        %1414 = vmatprep.subr.bf16.mxu0 0
        %1415 = vmatpush2.bf16.msra.mxu0 0
        %1416 = vmatprep.subr.bf16.mxu0 0
        %1417 = vmatpush2.bf16.msra.mxu0 0
        %1418 = vmatprep.subr.bf16.mxu0 0
        %1419 = vmatpush2.bf16.msra.mxu0 0
        %1420 = vmatprep.mubr.bf16.mxu0 0
        %1421 = vmatmul.mubr.bf16.gmra.mxu0 %v1386
        %v1422 = vpop.f32.mrf.mxu0
        %v1423 = vadd.f32 %v1359, %v1422
        %v1424 = vpop.f32.mrf.mxu0
        %v1425 = vpop.f32.mrf.mxu0
        %v1426 = vadd.f32 %v1359, %v1425
        %v1427 = vpop.f32.mrf.mxu0
        %1428 = vdwg.mxu0
        %v1429 = vlaneseq
        %v1430 = vshrl.u32 %v1429, 7
        %v1431 = vsub.s32 0, %v1430
        %v1432 = vrot.slane %v625, %v1431
        %v1433 = vmul.f32 %v1432, %v1423
        %v1434 = vmul.f32 %v1432, %v1426
        %v1435 = vadd.f32 %v476, %v1433
        %v1436 = vadd.f32 %v477, %v1434
        %v1437 = vsel %vm584, %v1435, 0.0
        %1438 = vadd.xlane.f32.xlu0 %v1437
        %v1439 = vpop.xlane.xlu0 %1438
        %v1440 = vsel %vm584, %v1436, 0.0
        %1441 = vadd.xlane.f32.xlu0 %v1440
        %v1442 = vpop.xlane.xlu0 %1441
        %v1443 = vmul.f32 %v1439, %v675
        %v1444 = vmul.f32 %v1442, %v675
        %v1445 = vsub.f32 %v1435, %v1443
        %v1446 = vsub.f32 %v1436, %v1444
        %v1447 = vmul.f32 %v1445, %v1445
        %v1448 = vmul.f32 %v1446, %v1446
        %v1449 = vsel %vm584, %v1447, 0.0
        %1450 = vadd.xlane.f32.xlu0 %v1449
        %v1451 = vpop.xlane.xlu0 %1450
        %v1452 = vsel %vm584, %v1448, 0.0
        %1453 = vadd.xlane.f32.xlu0 %v1452
        %v1454 = vpop.xlane.xlu0 %1453
        %v1455 = vmul.f32 %v1451, %v675
        %v1456 = vmul.f32 %v1454, %v675
        %v1457 = vadd.f32 %v1455, 1e-06
        %v1458 = vadd.f32 %v1456, 1e-06
        %v1459 = vrsqrt.pop %v1457
        %v1460 = vrsqrt.pop %v1458
        %v1461 = vmul.f32 %v1445, %v1459
        %v1462 = vmul.f32 %v1446, %v1460
        %v1463 = vadd.f32 %v664, 1.0
        %v1464 = vlaneseq
        %v1465 = vshrl.u32 %v1464, 7
        %v1466 = vsub.s32 0, %v1465
        %v1467 = vrot.slane %v1463, %v1466
        %v1468 = vmul.f32 %v1461, %v1467
        %v1469 = vmul.f32 %v1462, %v1467
        %1471 = vrot.lane.b32.xlu0 %v1432, 64
        %v1472 = vpop.permute.xlu0 %1471
        %v1474 = vadd.f32 %v1468, %v1472
        %v1475 = vadd.f32 %v1469, %v1472
        %v1476 = vpack.c.bf16 %v1475, %v1474
        %v1477 = vld [vmem:[#allocation8] sm:$0xff]
        %v1478 = vld [vmem:[#allocation8 + $0x8] sm:$0xff]
        %v1479 = vld [vmem:[#allocation8 + $0x10] sm:$0xff]
        %v1480 = vld [vmem:[#allocation8 + $0x18] sm:$0xff]
        %v1481 = vld [vmem:[#allocation8 + $0x20] sm:$0xff]
        %v1482 = vld [vmem:[#allocation8 + $0x28] sm:$0xff]
        %v1483 = vld [vmem:[#allocation8 + $0x30] sm:$0xff]
        %v1484 = vld [vmem:[#allocation8 + $0x38] sm:$0xff]
        %v1485 = vld [vmem:[%s9] sm:$0x3]
        %v1487 = vlaneseq
        %v1488 = vshrl.u32 %v1487, 7
        %v1489 = vsub.s32 0, %v1488
        %v1490 = vrot.slane %v1485, %v1489
        %v1491 = vlaneseq
        %v1492 = vshrl.u32 %v1491, 7
        %v1493 = vsub.s32 1, %v1492
        %v1494 = vrot.slane %v1485, %v1493
        %v1505 = vunpack.c.l.b16 %v1477
        %v1506 = vunpack.c.h.b16 %v1477
        %v1507 = vunpack.c.l.b16 %v1478
        %v1508 = vunpack.c.h.b16 %v1478
        %v1509 = vunpack.c.l.b16 %v1479
        %v1510 = vunpack.c.h.b16 %v1479
        %v1511 = vunpack.c.l.b16 %v1480
        %v1512 = vunpack.c.h.b16 %v1480
        %v1513 = vunpack.c.l.b16 %v1481
        %v1514 = vunpack.c.h.b16 %v1481
        %v1515 = vunpack.c.l.b16 %v1482
        %v1516 = vunpack.c.h.b16 %v1482
        %v1517 = vunpack.c.l.b16 %v1483
        %v1518 = vunpack.c.h.b16 %v1483
        %v1519 = vunpack.c.l.b16 %v1484
        %v1520 = vunpack.c.h.b16 %v1484
        %v1521 = vpack.c.b16 %v1507, %v1505
        %v1522 = vpack.c.b16 %v1508, %v1506
        %v1523 = vpack.c.b16 %v1511, %v1509
        %v1524 = vpack.c.b16 %v1512, %v1510
        %v1525 = vpack.c.b16 %v1515, %v1513
        %v1526 = vpack.c.b16 %v1516, %v1514
        %v1527 = vpack.c.b16 %v1519, %v1517
        %v1528 = vpack.c.b16 %v1520, %v1518
        %v1538 = vsel %vm584, %v1476, 0
        %1540 = vmatprep.subr.bf16.mxu0 0
        %1541 = vmatpush1.bf16.msra.mxu0 0
        %1542 = vmatprep.subr.bf16.mxu0 0
        %1543 = vmatpush1.bf16.msra.mxu0 0
        %1544 = vmatprep.subr.bf16.mxu0 0
        %1545 = vmatpush1.bf16.msra.mxu0 0
        %1546 = vmatprep.subr.bf16.mxu0 0
        %1547 = vmatpush1.bf16.msra.mxu0 0
        %1548 = vmatprep.subr.bf16.mxu0 %v1528
        %1549 = vmatpush1.bf16.msra.mxu0 %v1527
        %1550 = vmatprep.subr.bf16.mxu0 %v1526
        %1551 = vmatpush1.bf16.msra.mxu0 %v1525
        %1552 = vmatprep.subr.bf16.mxu0 %v1524
        %1553 = vmatpush1.bf16.msra.mxu0 %v1523
        %1554 = vmatprep.subr.bf16.mxu0 %v1522
        %1555 = vmatpush1.bf16.msra.mxu0 %v1521
        %1556 = vmatprep.subr.bf16.mxu0 0
        %1557 = vmatpush2.bf16.msra.mxu0 0
        %1558 = vmatprep.subr.bf16.mxu0 0
        %1559 = vmatpush2.bf16.msra.mxu0 0
        %1560 = vmatprep.subr.bf16.mxu0 0
        %1561 = vmatpush2.bf16.msra.mxu0 0
        %1562 = vmatprep.subr.bf16.mxu0 0
        %1563 = vmatpush2.bf16.msra.mxu0 0
        %1564 = vmatprep.subr.bf16.mxu0 0
        %1565 = vmatpush2.bf16.msra.mxu0 0
        %1566 = vmatprep.subr.bf16.mxu0 0
        %1567 = vmatpush2.bf16.msra.mxu0 0
        %1568 = vmatprep.subr.bf16.mxu0 0
        %1569 = vmatpush2.bf16.msra.mxu0 0
        %1570 = vmatprep.subr.bf16.mxu0 0
        %1571 = vmatpush2.bf16.msra.mxu0 0
        %1572 = vmatprep.mubr.bf16.mxu0 0
        %1573 = vmatmul.mubr.bf16.gmra.mxu0 %v1538
        %v1574 = vpop.f32.mrf.mxu0
        %v1575 = vadd.f32 %v1490, %v1574
        %v1576 = vpop.f32.mrf.mxu0
        %v1577 = vadd.f32 %v1494, %v1576
        %v1578 = vpop.f32.mrf.mxu0
        %v1579 = vadd.f32 %v1490, %v1578
        %v1580 = vpop.f32.mrf.mxu0
        %v1581 = vadd.f32 %v1494, %v1580
        %1582 = vdwg.mxu0
        %v1583 = vmul.f32 %v1575, 0.5
        %v1584 = vmul.f32 %v1577, 0.5
        %v1585 = vmul.f32 %v1579, 0.5
        %v1586 = vmul.f32 %v1581, 0.5
        %v1587 = vmul.f32 %v1575, 0.044715
        %v1588 = vmul.f32 %v1577, 0.044715
        %v1589 = vmul.f32 %v1579, 0.044715
        %v1590 = vmul.f32 %v1581, 0.044715
        %v1591 = vmul.f32 %v1587, %v1575
        %v1592 = vmul.f32 %v1588, %v1577
        %v1593 = vmul.f32 %v1589, %v1579
        %v1594 = vmul.f32 %v1590, %v1581
        %v1595 = vmul.f32 %v1591, %v1575
        %v1596 = vmul.f32 %v1592, %v1577
        %v1597 = vmul.f32 %v1593, %v1579
        %v1598 = vmul.f32 %v1594, %v1581
        %v1599 = vadd.f32 %v1575, %v1595
        %v1600 = vadd.f32 %v1577, %v1596
        %v1601 = vadd.f32 %v1579, %v1597
        %v1602 = vadd.f32 %v1581, %v1598
        %v1603 = vmul.f32 %v1599, 0.7978846
        %v1604 = vmul.f32 %v1600, 0.7978846
        %v1605 = vmul.f32 %v1601, 0.7978846
        %v1606 = vmul.f32 %v1602, 0.7978846
        %v1607 = vtanh.pop %v1603
        %v1608 = vtanh.pop %v1604
        %v1609 = vtanh.pop %v1605
        %v1610 = vtanh.pop %v1606
        %v1611 = vadd.f32 %v1607, 1.0
        %v1612 = vadd.f32 %v1608, 1.0
        %v1613 = vadd.f32 %v1609, 1.0
        %v1614 = vadd.f32 %v1610, 1.0
        %v1615 = vmul.f32 %v1583, %v1611
        %v1616 = vmul.f32 %v1584, %v1612
        %v1617 = vmul.f32 %v1585, %v1613
        %v1618 = vmul.f32 %v1586, %v1614
        %v1619 = vpack.c.bf16 %v1617, %v1615
        %v1620 = vpack.c.bf16 %v1618, %v1616
        %v1621 = vld [vmem:[%s10] sm:$0xf]
        %v1622 = vld [vmem:[%s10 + $0x4] sm:$0xf]
        %v1623 = vld [vmem:[%s10 + $0x8] sm:$0xf]
        %v1624 = vld [vmem:[%s10 + $0xc] sm:$0xf]
        %v1625 = vld [vmem:[%s10 + $0x10] sm:$0xf]
        %v1626 = vld [vmem:[%s10 + $0x14] sm:$0xf]
        %v1627 = vld [vmem:[%s10 + $0x18] sm:$0xf]
        %v1628 = vld [vmem:[%s10 + $0x1c] sm:$0xf]
        %v1629 = vld [vmem:[%s10 + $0x20] sm:$0xf]
        %v1630 = vld [vmem:[%s10 + $0x24] sm:$0xf]
        %v1631 = vld [vmem:[%s10 + $0x28] sm:$0xf]
        %v1632 = vld [vmem:[%s10 + $0x2c] sm:$0xf]
        %v1633 = vld [vmem:[%s10 + $0x30] sm:$0xf]
        %v1634 = vld [vmem:[%s10 + $0x34] sm:$0xf]
        %v1635 = vld [vmem:[%s10 + $0x38] sm:$0xf]
        %v1636 = vld [vmem:[%s10 + $0x3c] sm:$0xf]
        %v1637 = vld [vmem:[%s10 + $0x40] sm:$0xf]
        %v1638 = vld [vmem:[%s10 + $0x44] sm:$0xf]
        %v1639 = vld [vmem:[%s10 + $0x48] sm:$0xf]
        %v1640 = vld [vmem:[%s10 + $0x4c] sm:$0xf]
        %v1641 = vld [vmem:[%s10 + $0x50] sm:$0xf]
        %v1642 = vld [vmem:[%s10 + $0x54] sm:$0xf]
        %v1643 = vld [vmem:[%s10 + $0x58] sm:$0xf]
        %v1644 = vld [vmem:[%s10 + $0x5c] sm:$0xf]
        %v1645 = vld [vmem:[%s10 + $0x60] sm:$0xf]
        %v1646 = vld [vmem:[%s10 + $0x64] sm:$0xf]
        %v1647 = vld [vmem:[%s10 + $0x68] sm:$0xf]
        %v1648 = vld [vmem:[%s10 + $0x6c] sm:$0xf]
        %v1649 = vld [vmem:[%s10 + $0x70] sm:$0xf]
        %v1650 = vld [vmem:[%s10 + $0x74] sm:$0xf]
        %v1651 = vld [vmem:[%s10 + $0x78] sm:$0xf]
        %v1652 = vld [vmem:[%s10 + $0x7c] sm:$0xf]
        %v1653 = vld [vmem:[%s11] sm:$0x1]
        %v1655 = vlaneseq
        %v1656 = vshrl.u32 %v1655, 7
        %v1657 = vsub.s32 0, %v1656
        %v1658 = vrot.slane %v1653, %v1657
        %v1692 = vunpack.c.l.b16 %v1621
        %v1693 = vunpack.c.l.b16 %v1622
        %v1694 = vunpack.c.l.b16 %v1623
        %v1695 = vunpack.c.l.b16 %v1624
        %v1696 = vunpack.c.l.b16 %v1625
        %v1697 = vunpack.c.l.b16 %v1626
        %v1698 = vunpack.c.l.b16 %v1627
        %v1699 = vunpack.c.l.b16 %v1628
        %v1700 = vunpack.c.l.b16 %v1629
        %v1701 = vunpack.c.l.b16 %v1630
        %v1702 = vunpack.c.l.b16 %v1631
        %v1703 = vunpack.c.l.b16 %v1632
        %v1704 = vunpack.c.l.b16 %v1633
        %v1705 = vunpack.c.l.b16 %v1634
        %v1706 = vunpack.c.l.b16 %v1635
        %v1707 = vunpack.c.l.b16 %v1636
        %v1708 = vunpack.c.l.b16 %v1637
        %v1709 = vunpack.c.l.b16 %v1638
        %v1710 = vunpack.c.l.b16 %v1639
        %v1711 = vunpack.c.l.b16 %v1640
        %v1712 = vunpack.c.l.b16 %v1641
        %v1713 = vunpack.c.l.b16 %v1642
        %v1714 = vunpack.c.l.b16 %v1643
        %v1715 = vunpack.c.l.b16 %v1644
        %v1716 = vunpack.c.l.b16 %v1645
        %v1717 = vunpack.c.l.b16 %v1646
        %v1718 = vunpack.c.l.b16 %v1647
        %v1719 = vunpack.c.l.b16 %v1648
        %v1720 = vunpack.c.l.b16 %v1649
        %v1721 = vunpack.c.l.b16 %v1650
        %v1722 = vunpack.c.l.b16 %v1651
        %v1723 = vunpack.c.l.b16 %v1652
        %v1724 = vpack.c.b16 %v1693, %v1692
        %v1725 = vpack.c.b16 %v1695, %v1694
        %v1726 = vpack.c.b16 %v1697, %v1696
        %v1727 = vpack.c.b16 %v1699, %v1698
        %v1728 = vpack.c.b16 %v1701, %v1700
        %v1729 = vpack.c.b16 %v1703, %v1702
        %v1730 = vpack.c.b16 %v1705, %v1704
        %v1731 = vpack.c.b16 %v1707, %v1706
        %v1732 = vpack.c.b16 %v1709, %v1708
        %v1733 = vpack.c.b16 %v1711, %v1710
        %v1734 = vpack.c.b16 %v1713, %v1712
        %v1735 = vpack.c.b16 %v1715, %v1714
        %v1736 = vpack.c.b16 %v1717, %v1716
        %v1737 = vpack.c.b16 %v1719, %v1718
        %v1738 = vpack.c.b16 %v1721, %v1720
        %v1739 = vpack.c.b16 %v1723, %v1722
        %1756 = vmatprep.subr.bf16.mxu0 0
        %1757 = vmatpush1.bf16.msra.mxu0 %v1731
        %1758 = vmatprep.subr.bf16.mxu0 0
        %1759 = vmatpush1.bf16.msra.mxu0 %v1730
        %1760 = vmatprep.subr.bf16.mxu0 0
        %1761 = vmatpush1.bf16.msra.mxu0 %v1729
        %1762 = vmatprep.subr.bf16.mxu0 0
        %1763 = vmatpush1.bf16.msra.mxu0 %v1728
        %1764 = vmatprep.subr.bf16.mxu0 0
        %1765 = vmatpush1.bf16.msra.mxu0 %v1727
        %1766 = vmatprep.subr.bf16.mxu0 0
        %1767 = vmatpush1.bf16.msra.mxu0 %v1726
        %1768 = vmatprep.subr.bf16.mxu0 0
        %1769 = vmatpush1.bf16.msra.mxu0 %v1725
        %1770 = vmatprep.subr.bf16.mxu0 0
        %1771 = vmatpush1.bf16.msra.mxu0 %v1724
        %1772 = vmatprep.subr.bf16.mxu0 0
        %1773 = vmatpush2.bf16.msra.mxu0 %v1739
        %1774 = vmatprep.subr.bf16.mxu0 0
        %1775 = vmatpush2.bf16.msra.mxu0 %v1738
        %1776 = vmatprep.subr.bf16.mxu0 0
        %1777 = vmatpush2.bf16.msra.mxu0 %v1737
        %1778 = vmatprep.subr.bf16.mxu0 0
        %1779 = vmatpush2.bf16.msra.mxu0 %v1736
        %1780 = vmatprep.subr.bf16.mxu0 0
        %1781 = vmatpush2.bf16.msra.mxu0 %v1735
        %1782 = vmatprep.subr.bf16.mxu0 0
        %1783 = vmatpush2.bf16.msra.mxu0 %v1734
        %1784 = vmatprep.subr.bf16.mxu0 0
        %1785 = vmatpush2.bf16.msra.mxu0 %v1733
        %1786 = vmatprep.subr.bf16.mxu0 0
        %1787 = vmatpush2.bf16.msra.mxu0 %v1732
        %1788 = vmatprep.mubr.bf16.mxu0 %v1620
        %1789 = vmatmul.mubr.bf16.gmra.mxu0 %v1619
        %v1790 = vpop.f32.mrf.mxu0
        %v1791 = vadd.f32 %v1658, %v1790
        %v1792 = vpop.f32.mrf.mxu0
        %v1793 = vpop.f32.mrf.mxu0
        %v1794 = vadd.f32 %v1658, %v1793
        %v1795 = vpop.f32.mrf.mxu0
        %1796 = vdwg.mxu0
        %v1797 = vlaneseq
        %v1798 = vshrl.u32 %v1797, 7
        %v1799 = vsub.s32 0, %v1798
        %v1800 = vrot.slane %v664, %v1799
        %1803 = vrot.lane.b32.xlu0 %v1791, 64
        %v1804 = vpop.permute.xlu0 %1803
        %1805 = vrot.lane.b32.xlu0 %v1794, 64
        %v1806 = vpop.permute.xlu0 %1805
        %v1809 = vmul.f32 %v1800, %v1804
        %v1810 = vmul.f32 %v1800, %v1806
        %1813 = vrot.lane.b32.xlu0 %v1809, 64
        %v1814 = vpop.permute.xlu0 %1813
        %1815 = vrot.lane.b32.xlu0 %v1810, 64
        %v1816 = vpop.permute.xlu0 %1815
        %v1819 = vadd.f32 %v1435, %v1814
        %v1820 = vadd.f32 %v1436, %v1816
        %1821 = vst.msk [vmem:[%s469] sm:$0xff] %vm584, %v1819
        %1822 = vst.msk [vmem:[%s469 + $0x8] sm:$0xff] %vm584, %v1820
        %s1823 = sand.u32 %s300, 1
        %s1824 = scalar_lea.sflag [#allocation5], %s1823
        %s1825 = sand.u32 %s300, 1
        %s1826 = smul.addr %s1825, 16
        %s1827 = scalar_lea.vmem [#allocation9], %s1826
        // Predicated region
        $region81: #{tpu_custom_call.1} parent=67 // pred_check
          %p1828 = pneg %p310
        $region82: #{tpu_custom_call.1} parent=67 // pred_check_branch
          %1830 = sbr.rel (%p1828) target = $region84
        $region83: #{tpu_custom_call.1} parent=67 // pred_region
          %s1832 = ssub.s32 256, 256
          %1833 = vsyncadd %s1824, %s1832
          %s1834 = smul.addr %s30, 2
          %s1835 = smul.addr %s1834, 128
          %s1836 = scalar_lea.hbm %s12, %s1835
          %s1837 = sshll.u32 %s1827, 4
          %s1838 = int_to_ptr.vmem [resolvable:$true] %s1837
          %1843 = dma.vmem_to_hbm [thread:$0]  %s1838, 256, %s1836, %s1824, 128, 128, 8
        $region84: #{tpu_custom_call.1} parent=67 // pred_fallthru
          _
      $region68: #{tpu_custom_call.1} parent=5 // pred_fallthru
        _
      %p1844 = scmp.le.s32.totalorder 2, %s25
      // Predicated region
      $region85: #{tpu_custom_call.1} parent=5 // pred_check
        %p1845 = pneg %p1844
      $region86: #{tpu_custom_call.1} parent=5 // pred_check_branch
        %1847 = sbr.rel (%p1845) target = $region88
      $region87: #{tpu_custom_call.1} parent=5 // pred_region
        %s1848 = ssub.s32 %s25, 2
        // Predicated region
        $region89: #{tpu_custom_call.1} parent=87 // pred_check
          %p1849 = pneg %p316
        $region90: #{tpu_custom_call.1} parent=87 // pred_check_branch
          %1851 = sbr.rel (%p1849) target = $region92
        $region91: #{tpu_custom_call.1} parent=87 // pred_region
          %s1852 = sand.u32 %s301, 1
          %s1853 = scalar_lea.sflag [#allocation5], %s1852
          %s1854 = sand.u32 %s301, 1
          %s1855 = smul.addr %s1854, 16
          %s1856 = scalar_lea.vmem [#allocation9], %s1855
          %1857 = dma.done %s1853, 256
        $region92: #{tpu_custom_call.1} parent=87 // pred_fallthru
          _
      $region88: #{tpu_custom_call.1} parent=5 // pred_fallthru
        _
    $region6: #{tpu_custom_call.1} parent=1 // loop_footer
      %s29 = sadd.s32 1, %s25
    $region7: #{tpu_custom_call.1} parent=1 // loop_footer_branch
      %24 = sbr.rel target = $region3
    $region8: #{tpu_custom_call.1} parent=1 // loop_exit
      _
    %1858 = vsyncpa [#allocation4], 1
    %s1859 = scalar_lea.sflag [#allocation4], 1
    %1860 = vsyncpa %s1859, 1
    %1861 = vsyncpa [#allocation7], 1
    %1862 = vsyncpa [#allocation5], 1
    %s1863 = scalar_lea.sflag [#allocation5], 1
    %1864 = vsyncpa %s1863, 1

</llo_original>
